<compile_context>
chip_gen: v7x
topology: tpu7x:2x2x1
jax: 0.10.0
libtpu: 0.0.40
codegen_flags: <defaults>
</compile_context>

<pallas_src>
import functools

import jax
import jax.numpy as jnp
from jax.experimental import pallas as pl
from jax.experimental.pallas import tpu as pltpu

IMG_SIZE = 32
NUM_HEADS = 4
QKV_BIAS = True
WINDOW = 8

VMEM_LIMIT_BYTES = 32 * 1024 * 1024  # safe on v5e/v6e (128 MiB) and v7x (64 MiB)


def _round_up(x, m):
    return ((x + m - 1) // m) * m


# ----------------------------- Linear kernel -------------------------------
def _linear_kernel(x_ref, w_ref, b_ref, o_ref):
    o_ref[...] = (
        jnp.dot(x_ref[...], w_ref[...], preferred_element_type=jnp.float32)
        + b_ref[...]
    ).astype(o_ref.dtype)


def pallas_linear(x2d, w, b, *, block_rows=512):
    """x2d: (N, K) @ w: (K, F) + b: (F,) -> (N, F), tiled over N ("parallel")."""
    N, K = x2d.shape
    F = w.shape[1]
    Nt = min(block_rows, _round_up(N, 8))
    N_pad = _round_up(N, Nt)
    if N_pad != N:
        x2d = jnp.pad(x2d, ((0, N_pad - N), (0, 0)))
    out = pl.pallas_call(
        _linear_kernel,
        out_shape=jax.ShapeDtypeStruct((N_pad, F), x2d.dtype),
        grid=(N_pad // Nt,),
        in_specs=[
            pl.BlockSpec((Nt, K), lambda i: (i, 0)),
            pl.BlockSpec((K, F), lambda i: (0, 0)),
            pl.BlockSpec((1, F), lambda i: (0, 0)),
        ],
        out_specs=pl.BlockSpec((Nt, F), lambda i: (i, 0)),
        compiler_params=pltpu.CompilerParams(
            dimension_semantics=("parallel",),
            vmem_limit_bytes=VMEM_LIMIT_BYTES,
        ),
    )(x2d, w, b.reshape(1, F))
    return out[:N] if N_pad != N else out


# --------------------------- Attention kernel ------------------------------
def _attn_kernel(q_ref, k_ref, v_ref, o_ref, *, scale):
    # Refs are (hd, ws, Mt): per-head dim hd (=2) on the leading (unrolled)
    # axis, window position ws (=8) on the sublane axis, flattened
    # (B*C*group*head) batch Mt on the 128-wide lane axis.
    hd, ws, _ = q_ref.shape
    # Fold the softmax scale into q (ws*hd*Mt muls instead of ws*ws*Mt).
    qs = [q_ref[d] * scale for d in range(hd)]           # each (ws, Mt)
    ks = [k_ref[d] for d in range(hd)]
    # scores s[i, j, m] = sum_d q[d, i, m] * k[d, j, m]
    s = qs[0][:, None, :] * ks[0][None, :, :]
    for d in range(1, hd):
        s = s + qs[d][:, None, :] * ks[d][None, :, :]    # (ws, ws, Mt)
    # softmax over the key index j (axis 1); normalization deferred.
    s = s - jnp.max(s, axis=1, keepdims=True)
    p = jnp.exp(s)                                       # unnormalized probs
    inv = pl.reciprocal(jnp.sum(p, axis=1), approx=True)  # (ws, Mt), EUP slot
    # o[d, i, m] = inv[i, m] * sum_j p[i, j, m] * v[d, j, m]
    for d in range(hd):
        o_ref[d] = (jnp.sum(p * v_ref[d][None, :, :], axis=1) * inv).astype(
            o_ref.dtype
        )


def pallas_group_attention(q, k, v, scale, *, block_m=1024):
    """q/k/v: (hd, ws, M) -> (hd, ws, M), tiled over the lane axis M."""
    hd, ws, M = q.shape
    Mt = min(block_m, _round_up(M, 128))
    M_pad = _round_up(M, Mt)
    if M_pad != M:
        pad = ((0, 0), (0, 0), (0, M_pad - M))
        q, k, v = jnp.pad(q, pad), jnp.pad(k, pad), jnp.pad(v, pad)
    spec = pl.BlockSpec((hd, ws, Mt), lambda i: (0, 0, i))
    out = pl.pallas_call(
        functools.partial(_attn_kernel, scale=scale),
        out_shape=jax.ShapeDtypeStruct((hd, ws, M_pad), q.dtype),
        grid=(M_pad // Mt,),
        in_specs=[spec, spec, spec],
        out_specs=spec,
        compiler_params=pltpu.CompilerParams(
            dimension_semantics=("parallel",),
            vmem_limit_bytes=VMEM_LIMIT_BYTES,
        ),
    )(q, k, v)
    return out[..., :M] if M_pad != M else out


# ------------------------------ Parameters ---------------------------------
def init_params(key):
    k1, k2, k3, k4 = jax.random.split(key, 4)
    w_qkv = jax.random.normal(k1, (IMG_SIZE, 3 * IMG_SIZE), jnp.float32) * 0.02
    if QKV_BIAS:
        b_qkv = jax.random.normal(k2, (3 * IMG_SIZE,), jnp.float32) * 0.02
    else:
        b_qkv = jnp.zeros((3 * IMG_SIZE,), jnp.float32)
    w_proj = jax.random.normal(k3, (IMG_SIZE, IMG_SIZE), jnp.float32) * 0.02
    b_proj = jax.random.normal(k4, (IMG_SIZE,), jnp.float32) * 0.02
    return dict(w_qkv=w_qkv, b_qkv=b_qkv, w_proj=w_proj, b_proj=b_proj)


# ------------------------------- Forward ------------------------------------
def group_attention_forward(params, x):
    B, C, H, W = x.shape
    assert W == IMG_SIZE and H % WINDOW == 0
    ws, nh = WINDOW, NUM_HEADS
    hd = ws // nh                           # actual per-head dim inside attn (= 2)
    # Quirk mirrored from the PyTorch module: scale uses img_size // num_heads
    # (= 8), not the actual per-head dim hd (= 2).
    scale = float(IMG_SIZE // nh) ** -0.5
    h_group, w_group = H // ws, W // ws
    G = h_group * w_group
    M = B * C * G * nh

    # --- qkv Linear (Pallas matmul, tiled over rows) ---
    qkv = pallas_linear(x.reshape(-1, W), params["w_qkv"], params["b_qkv"])

    # --- exact flat reshape of the PyTorch module, then a single transpose to
    #     the lane-dense kernel layout (3, hd, ws, M) (M on the lane axis) ---
    qkv = qkv.reshape(B, C, G, ws, 3, nh, hd)
    qkv = jnp.transpose(qkv, (4, 6, 3, 0, 1, 2, 5)).reshape(3, hd, ws, M)
    q, k, v = qkv[0], qkv[1], qkv[2]

    o = pallas_group_attention(q, k, v, scale)            # (hd, ws, M)

    # --- back to the module's ordering and its reshape chain (glue) ---
    o = o.reshape(hd, ws, B, C, G, nh)
    o = jnp.transpose(o, (2, 3, 5, 4, 1, 0))              # (B, C, nh, G, ws, hd)
    o = o.reshape(B, h_group, w_group, ws, ws, C)
    o = jnp.swapaxes(o, 2, 3)                             # (B, hg, ws, wg, ws, C)
    o = o.reshape(B, C, H, W)

    # --- proj Linear (Pallas matmul, tiled over rows) ---
    out = pallas_linear(o.reshape(-1, W), params["w_proj"], params["b_proj"])
    return out.reshape(B, C, H, W)


# ------------------------- Pure-JAX reference -------------------------------
def group_attention_reference(params, x):
    B, C, H, W = x.shape
    ws, nh = WINDOW, NUM_HEADS
    hd = ws // nh
    scale = float(IMG_SIZE // nh) ** -0.5
    hg, wg = H // ws, W // ws
    G = hg * wg
    x5 = x.reshape(B, C, hg, ws, W)
    qkv = x5 @ params["w_qkv"] + params["b_qkv"]
    qkv = qkv.reshape(B, C, G, -1, 3, nh, hd)
    qkv = jnp.transpose(qkv, (4, 0, 1, 2, 5, 3, 6))
    q, k, v = qkv[0], qkv[1], qkv[2]
    attn = jnp.einsum("...id,...jd->...ij", q, k) * scale
    attn = jax.nn.softmax(attn, axis=-1)
    o = jnp.einsum("...ij,...jd->...id", attn, v)
    o = jnp.swapaxes(o, 2, 3).reshape(B, hg, wg, ws, ws, C)
    o = jnp.swapaxes(o, 2, 3).reshape(B, C, H, W)
    return o @ params["w_proj"] + params["b_proj"]


if __name__ == "__main__":
    key = jax.random.PRNGKey(0)
    pkey, xkey = jax.random.split(key)
    params = init_params(pkey)

    # W must equal img_size (=32) for the module's Linear layers; H % window == 0.
    B, C, H, W = 2, 4, 16, IMG_SIZE
    x = jax.random.normal(xkey, (B, C, H, W), jnp.float32)

    out = jax.jit(group_attention_forward)(params, x)
    out = jax.block_until_ready(out)

    ref = group_attention_reference(params, x)
    assert out.shape == (B, C, H, W)
    # Slightly relaxed tolerance: pl.reciprocal(approx=True) is an approximate
    # EUP reciprocal (error is further damped by the proj Linear).
    if not bool(jnp.allclose(out, ref, atol=2e-4, rtol=2e-4)):
        raise AssertionError("Pallas output mismatch vs JAX reference")
    print("KERNEL_OK")
</pallas_src>

<mosaic_0001>
module attributes {stable_mosaic.version = 11 : i64} {
  func.func @_linear_kernel(%arg0: i32, %arg1: memref<128x32xf32, #tpu.memory_space<vmem>>, %arg2: memref<32x96xf32, #tpu.memory_space<vmem>>, %arg3: memref<1x96xf32, #tpu.memory_space<vmem>>, %arg4: memref<128x96xf32, #tpu.memory_space<vmem>>) attributes {dimension_semantics = [#tpu.dimension_semantics<parallel>], iteration_bounds = array<i64: 1>, scalar_prefetch = 0 : i64, scratch_operands = 0 : i64, tpu.core_type = #tpu.core_type<tc>, window_params = [{transform_indices = @transform_0, window_bounds = array<i64: 128, 32>}, {pipeline_mode = #tpu.pipeline_mode<synchronous>, transform_indices = @transform_1, window_bounds = array<i64: 32, 96>}, {pipeline_mode = #tpu.pipeline_mode<synchronous>, transform_indices = @transform_2, window_bounds = array<i64: 1, 96>}, {transform_indices = @transform_3, window_bounds = array<i64: 128, 96>}]} {
    %c0 = arith.constant 0 : index
    %c0_0 = arith.constant 0 : index
    %0 = vector.load %arg1[%c0, %c0_0] : memref<128x32xf32, #tpu.memory_space<vmem>>, vector<128x32xf32>
    %c0_1 = arith.constant 0 : index
    %c0_2 = arith.constant 0 : index
    %1 = vector.load %arg2[%c0_1, %c0_2] : memref<32x96xf32, #tpu.memory_space<vmem>>, vector<32x96xf32>
    %cst = arith.constant dense<0.000000e+00> : vector<128x96xf32>
    %2 = tpu.matmul %0, %1, %cst {dimension_numbers = #tpu.dot_dimension_numbers<[1], [0], [0], [1], [0, 0, 1, 1], [], []>} : vector<128x32xf32>, vector<32x96xf32>, vector<128x96xf32> -> vector<128x96xf32>
    %c0_3 = arith.constant 0 : index
    %c0_4 = arith.constant 0 : index
    %3 = vector.load %arg3[%c0_3, %c0_4] : memref<1x96xf32, #tpu.memory_space<vmem>>, vector<1x96xf32>
    %4 = vector.broadcast %3 : vector<1x96xf32> to vector<128x96xf32>
    %5 = arith.addf %2, %4 : vector<128x96xf32>
    %c0_5 = arith.constant 0 : index
    %c0_6 = arith.constant 0 : index
    %6 = vector.load %arg4[%c0_5, %c0_6] : memref<128x96xf32, #tpu.memory_space<vmem>>, vector<128x96xf32>
    tpu.vector_store %arg4[%c0_5, %c0_6], %5 {strides = array<i32>} : memref<128x96xf32, #tpu.memory_space<vmem>>, vector<128x96xf32>,
    return
  }
  func.func @transform_0(%arg0: i32) -> (i32, i32) {
    %c0_i32 = arith.constant 0 : i32
    %c0_i32_0 = arith.constant 0 : i32
    return %arg0, %c0_i32 : i32, i32
  }
  func.func @transform_1(%arg0: i32) -> (i32, i32) {
    %c0_i32 = arith.constant 0 : i32
    %c0_i32_0 = arith.constant 0 : i32
    %c0_i32_1 = arith.constant 0 : i32
    return %c0_i32, %c0_i32_0 : i32, i32
  }
  func.func @transform_2(%arg0: i32) -> (i32, i32) {
    %c0_i32 = arith.constant 0 : i32
    %c0_i32_0 = arith.constant 0 : i32
    %c0_i32_1 = arith.constant 0 : i32
    return %c0_i32, %c0_i32_0 : i32, i32
  }
  func.func @transform_3(%arg0: i32) -> (i32, i32) {
    %c0_i32 = arith.constant 0 : i32
    %c0_i32_0 = arith.constant 0 : i32
    return %arg0, %c0_i32 : i32, i32
  }
}

module attributes {stable_mosaic.version = 11 : i64} {
  func.func @_attn_kernel(%arg0: i32, %arg1: memref<2x8x256xf32, #tpu.memory_space<vmem>>, %arg2: memref<2x8x256xf32, #tpu.memory_space<vmem>>, %arg3: memref<2x8x256xf32, #tpu.memory_space<vmem>>, %arg4: memref<2x8x256xf32, #tpu.memory_space<vmem>>) attributes {dimension_semantics = [#tpu.dimension_semantics<parallel>], iteration_bounds = array<i64: 1>, scalar_prefetch = 0 : i64, scratch_operands = 0 : i64, tpu.core_type = #tpu.core_type<tc>, window_params = [{transform_indices = @transform_0, window_bounds = array<i64: 2, 8, 256>}, {transform_indices = @transform_1, window_bounds = array<i64: 2, 8, 256>}, {transform_indices = @transform_2, window_bounds = array<i64: 2, 8, 256>}, {transform_indices = @transform_3, window_bounds = array<i64: 2, 8, 256>}]} {
    %c0 = arith.constant 0 : index
    %c0_0 = arith.constant 0 : index
    %c0_1 = arith.constant 0 : index
    %0 = vector.load %arg1[%c0, %c0_0, %c0_1] : memref<2x8x256xf32, #tpu.memory_space<vmem>>, vector<1x8x256xf32>
    %1 = vector.shape_cast %0 : vector<1x8x256xf32> to vector<8x256xf32>
    %cst = arith.constant 0.353553385 : f32
    %2 = vector.broadcast %cst : f32 to vector<8x256xf32>
    %3 = arith.mulf %1, %2 : vector<8x256xf32>
    %c1 = arith.constant 1 : index
    %c0_2 = arith.constant 0 : index
    %c0_3 = arith.constant 0 : index
    %4 = vector.load %arg1[%c1, %c0_2, %c0_3] : memref<2x8x256xf32, #tpu.memory_space<vmem>>, vector<1x8x256xf32>
    %5 = vector.shape_cast %4 : vector<1x8x256xf32> to vector<8x256xf32>
    %cst_4 = arith.constant 0.353553385 : f32
    %6 = vector.broadcast %cst_4 : f32 to vector<8x256xf32>
    %7 = arith.mulf %5, %6 : vector<8x256xf32>
    %c0_5 = arith.constant 0 : index
    %c0_6 = arith.constant 0 : index
    %c0_7 = arith.constant 0 : index
    %8 = vector.load %arg2[%c0_5, %c0_6, %c0_7] : memref<2x8x256xf32, #tpu.memory_space<vmem>>, vector<1x8x256xf32>
    %9 = vector.shape_cast %8 : vector<1x8x256xf32> to vector<8x256xf32>
    %c1_8 = arith.constant 1 : index
    %c0_9 = arith.constant 0 : index
    %c0_10 = arith.constant 0 : index
    %10 = vector.load %arg2[%c1_8, %c0_9, %c0_10] : memref<2x8x256xf32, #tpu.memory_space<vmem>>, vector<1x8x256xf32>
    %11 = vector.shape_cast %10 : vector<1x8x256xf32> to vector<8x256xf32>
    %12 = vector.shape_cast %3 : vector<8x256xf32> to vector<8x1x256xf32>
    %13 = vector.shape_cast %9 : vector<8x256xf32> to vector<1x8x256xf32>
    %14 = vector.broadcast %12 : vector<8x1x256xf32> to vector<8x8x256xf32>
    %15 = vector.broadcast %13 : vector<1x8x256xf32> to vector<8x8x256xf32>
    %16 = arith.mulf %14, %15 : vector<8x8x256xf32>
    %17 = vector.shape_cast %7 : vector<8x256xf32> to vector<8x1x256xf32>
    %18 = vector.shape_cast %11 : vector<8x256xf32> to vector<1x8x256xf32>
    %19 = vector.broadcast %17 : vector<8x1x256xf32> to vector<8x8x256xf32>
    %20 = vector.broadcast %18 : vector<1x8x256xf32> to vector<8x8x256xf32>
    %21 = arith.mulf %19, %20 : vector<8x8x256xf32>
    %22 = arith.addf %16, %21 : vector<8x8x256xf32>
    %cst_11 = arith.constant dense<0xFF800000> : vector<8x256xf32>
    %23 = vector.multi_reduction <maximumf>, %22, %cst_11 [1] : vector<8x8x256xf32> to vector<8x256xf32>
    %24 = vector.shape_cast %23 : vector<8x256xf32> to vector<8x1x256xf32>
    %25 = vector.broadcast %24 : vector<8x1x256xf32> to vector<8x8x256xf32>
    %26 = arith.subf %22, %25 : vector<8x8x256xf32>
    %27 = math.exp %26 : vector<8x8x256xf32>
    %cst_12 = arith.constant dense<0.000000e+00> : vector<8x256xf32>
    %28 = vector.multi_reduction <add>, %27, %cst_12 [1] : vector<8x8x256xf32> to vector<8x256xf32>
    %29 = tpu.reciprocal %28 {approx = true} : vector<8x256xf32> -> vector<8x256xf32>
    %c0_13 = arith.constant 0 : index
    %c0_14 = arith.constant 0 : index
    %c0_15 = arith.constant 0 : index
    %30 = vector.load %arg3[%c0_13, %c0_14, %c0_15] : memref<2x8x256xf32, #tpu.memory_space<vmem>>, vector<1x8x256xf32>
    %31 = vector.shape_cast %30 : vector<1x8x256xf32> to vector<8x256xf32>
    %32 = vector.shape_cast %31 : vector<8x256xf32> to vector<1x8x256xf32>
    %33 = vector.broadcast %32 : vector<1x8x256xf32> to vector<8x8x256xf32>
    %34 = arith.mulf %27, %33 : vector<8x8x256xf32>
    %cst_16 = arith.constant dense<0.000000e+00> : vector<8x256xf32>
    %35 = vector.multi_reduction <add>, %34, %cst_16 [1] : vector<8x8x256xf32> to vector<8x256xf32>
    %36 = arith.mulf %35, %29 : vector<8x256xf32>
    %c0_17 = arith.constant 0 : index
    %c0_18 = arith.constant 0 : index
    %c0_19 = arith.constant 0 : index
    %37 = vector.load %arg4[%c0_17, %c0_18, %c0_19] : memref<2x8x256xf32, #tpu.memory_space<vmem>>, vector<1x8x256xf32>
    %38 = vector.shape_cast %37 : vector<1x8x256xf32> to vector<8x256xf32>
    %39 = vector.shape_cast %36 : vector<8x256xf32> to vector<1x8x256xf32>
    tpu.vector_store %arg4[%c0_17, %c0_18, %c0_19], %39 {strides = array<i32>} : memref<2x8x256xf32, #tpu.memory_space<vmem>>, vector<1x8x256xf32>,
    %c1_20 = arith.constant 1 : index
    %c0_21 = arith.constant 0 : index
    %c0_22 = arith.constant 0 : index
    %40 = vector.load %arg3[%c1_20, %c0_21, %c0_22] : memref<2x8x256xf32, #tpu.memory_space<vmem>>, vector<1x8x256xf32>
    %41 = vector.shape_cast %40 : vector<1x8x256xf32> to vector<8x256xf32>
    %42 = vector.shape_cast %41 : vector<8x256xf32> to vector<1x8x256xf32>
    %43 = vector.broadcast %42 : vector<1x8x256xf32> to vector<8x8x256xf32>
    %44 = arith.mulf %27, %43 : vector<8x8x256xf32>
    %cst_23 = arith.constant dense<0.000000e+00> : vector<8x256xf32>
    %45 = vector.multi_reduction <add>, %44, %cst_23 [1] : vector<8x8x256xf32> to vector<8x256xf32>
    %46 = arith.mulf %45, %29 : vector<8x256xf32>
    %c1_24 = arith.constant 1 : index
    %c0_25 = arith.constant 0 : index
    %c0_26 = arith.constant 0 : index
    %47 = vector.load %arg4[%c1_24, %c0_25, %c0_26] : memref<2x8x256xf32, #tpu.memory_space<vmem>>, vector<1x8x256xf32>
    %48 = vector.shape_cast %47 : vector<1x8x256xf32> to vector<8x256xf32>
    %49 = vector.shape_cast %46 : vector<8x256xf32> to vector<1x8x256xf32>
    tpu.vector_store %arg4[%c1_24, %c0_25, %c0_26], %49 {strides = array<i32>} : memref<2x8x256xf32, #tpu.memory_space<vmem>>, vector<1x8x256xf32>,
    return
  }
  func.func @transform_0(%arg0: i32) -> (i32, i32, i32) {
    %c0_i32 = arith.constant 0 : i32
    %c0_i32_0 = arith.constant 0 : i32
    %c0_i32_1 = arith.constant 0 : i32
    return %c0_i32, %c0_i32_0, %arg0 : i32, i32, i32
  }
  func.func @transform_1(%arg0: i32) -> (i32, i32, i32) {
    %c0_i32 = arith.constant 0 : i32
    %c0_i32_0 = arith.constant 0 : i32
    %c0_i32_1 = arith.constant 0 : i32
    return %c0_i32, %c0_i32_0, %arg0 : i32, i32, i32
  }
  func.func @transform_2(%arg0: i32) -> (i32, i32, i32) {
    %c0_i32 = arith.constant 0 : i32
    %c0_i32_0 = arith.constant 0 : i32
    %c0_i32_1 = arith.constant 0 : i32
    return %c0_i32, %c0_i32_0, %arg0 : i32, i32, i32
  }
  func.func @transform_3(%arg0: i32) -> (i32, i32, i32) {
    %c0_i32 = arith.constant 0 : i32
    %c0_i32_0 = arith.constant 0 : i32
    %c0_i32_1 = arith.constant 0 : i32
    return %c0_i32, %c0_i32_0, %arg0 : i32, i32, i32
  }
}

module attributes {stable_mosaic.version = 11 : i64} {
  func.func @_linear_kernel(%arg0: i32, %arg1: memref<128x32xf32, #tpu.memory_space<vmem>>, %arg2: memref<32x32xf32, #tpu.memory_space<vmem>>, %arg3: memref<1x32xf32, #tpu.memory_space<vmem>>, %arg4: memref<128x32xf32, #tpu.memory_space<vmem>>) attributes {dimension_semantics = [#tpu.dimension_semantics<parallel>], iteration_bounds = array<i64: 1>, scalar_prefetch = 0 : i64, scratch_operands = 0 : i64, tpu.core_type = #tpu.core_type<tc>, window_params = [{transform_indices = @transform_0, window_bounds = array<i64: 128, 32>}, {pipeline_mode = #tpu.pipeline_mode<synchronous>, transform_indices = @transform_1, window_bounds = array<i64: 32, 32>}, {pipeline_mode = #tpu.pipeline_mode<synchronous>, transform_indices = @transform_2, window_bounds = array<i64: 1, 32>}, {transform_indices = @transform_3, window_bounds = array<i64: 128, 32>}]} {
    %c0 = arith.constant 0 : index
    %c0_0 = arith.constant 0 : index
    %0 = vector.load %arg1[%c0, %c0_0] : memref<128x32xf32, #tpu.memory_space<vmem>>, vector<128x32xf32>
    %c0_1 = arith.constant 0 : index
    %c0_2 = arith.constant 0 : index
    %1 = vector.load %arg2[%c0_1, %c0_2] : memref<32x32xf32, #tpu.memory_space<vmem>>, vector<32x32xf32>
    %cst = arith.constant dense<0.000000e+00> : vector<128x32xf32>
    %2 = tpu.matmul %0, %1, %cst {dimension_numbers = #tpu.dot_dimension_numbers<[1], [0], [0], [1], [0, 0, 1, 1], [], []>} : vector<128x32xf32>, vector<32x32xf32>, vector<128x32xf32> -> vector<128x32xf32>
    %c0_3 = arith.constant 0 : index
    %c0_4 = arith.constant 0 : index
    %3 = vector.load %arg3[%c0_3, %c0_4] : memref<1x32xf32, #tpu.memory_space<vmem>>, vector<1x32xf32>
    %4 = vector.broadcast %3 : vector<1x32xf32> to vector<128x32xf32>
    %5 = arith.addf %2, %4 : vector<128x32xf32>
    %c0_5 = arith.constant 0 : index
    %c0_6 = arith.constant 0 : index
    %6 = vector.load %arg4[%c0_5, %c0_6] : memref<128x32xf32, #tpu.memory_space<vmem>>, vector<128x32xf32>
    tpu.vector_store %arg4[%c0_5, %c0_6], %5 {strides = array<i32>} : memref<128x32xf32, #tpu.memory_space<vmem>>, vector<128x32xf32>,
    return
  }
  func.func @transform_0(%arg0: i32) -> (i32, i32) {
    %c0_i32 = arith.constant 0 : i32
    %c0_i32_0 = arith.constant 0 : i32
    return %arg0, %c0_i32 : i32, i32
  }
  func.func @transform_1(%arg0: i32) -> (i32, i32) {
    %c0_i32 = arith.constant 0 : i32
    %c0_i32_0 = arith.constant 0 : i32
    %c0_i32_1 = arith.constant 0 : i32
    return %c0_i32, %c0_i32_0 : i32, i32
  }
  func.func @transform_2(%arg0: i32) -> (i32, i32) {
    %c0_i32 = arith.constant 0 : i32
    %c0_i32_0 = arith.constant 0 : i32
    %c0_i32_1 = arith.constant 0 : i32
    return %c0_i32, %c0_i32_0 : i32, i32
  }
  func.func @transform_3(%arg0: i32) -> (i32, i32) {
    %c0_i32 = arith.constant 0 : i32
    %c0_i32_0 = arith.constant 0 : i32
    return %arg0, %c0_i32 : i32, i32
  }
}

</mosaic_0001>

<llo_original>
// kernel: group_attention_forward.3
$region0: #{group_attention_forward.3}
  #allocation0 [shape = 'u32[]', space=smem, size = 0x4, offset = 0x4, fixed_abs, tag = 'smem constant byte address 0x4 - core index']
  #allocation1 [shape = 'u32[144,128]{1,0:T(1,128)}', space=vmem, size = 0x12000, scoped, tag = 'internal scratch']
  %s0 = inlined_call_operand.hbm [shape: f32[128,32], index: 0, kind: input, shape index: {}]
  %s1 = inlined_call_operand.hbm [shape: f32[32,96], index: 1, kind: input, shape index: {}]
  %s2 = inlined_call_operand.hbm [shape: f32[1,96], index: 2, kind: input, shape index: {}]
  %s3 = inlined_call_operand.vmem [shape: f32[128,96], index: 3, kind: output, shape index: {}]
  %s4 = sld [smem:[#allocation0]]
  $region34: #{group_attention_forward.3} parent=0
    _
  %s6 = ssub.s32 1, %s4
  %s7 = scalar_select 0, %s6, %s4
  $region1: #{group_attention_forward.3} parent=0
    #allocation2 [shape = 'u8[65536]{0}', space=vmem, size = 0x10000, scoped, tag = 'input window, operand 0, single buffered']
    #allocation3 [shape = 's32[1]{0}', space=sflag, size = 0x4, scoped, tag = 'scoped memory for group_attention_forward.3']
    #allocation4 [shape = 'u8[16384]{0}', space=vmem, size = 0x4000, scoped, tag = 'input window, operand 1, single buffered']
    #allocation5 [shape = 's32[1]{0}', space=sflag, size = 0x4, scoped, tag = 'scoped memory for group_attention_forward.3']
    #allocation6 [shape = 'u8[512]{0}', space=vmem, size = 0x400, scoped, tag = 'input window, operand 2, single buffered']
    %8 = vsyncpa [#allocation3], 0
    %9 = vsyncpa [#allocation5], 0
    // Predicated region
    $region2: #{group_attention_forward.3} parent=1 // pred_check
      _
    $region3: #{group_attention_forward.3} parent=1 // pred_check_branch
      %11 = sbr.rel (0) target = $region5
    $region4: #{group_attention_forward.3} parent=1 // pred_region
      %s13 = ssub.s32 2048, 2048
      %14 = vsyncadd [#allocation3], %s13
      %s15 = sshll.u32 [#allocation2], 4
      %s16 = int_to_ptr.vmem [resolvable:$true] %s15
      %21 = dma.hbm_to_vmem [thread:$0]  %s0, 2048, %s16, [#allocation3], 128, 128, 8
    $region5: #{group_attention_forward.3} parent=1 // pred_fallthru
      _
    // Predicated region
    $region6: #{group_attention_forward.3} parent=1 // pred_check
      _
    $region7: #{group_attention_forward.3} parent=1 // pred_check_branch
      %23 = sbr.rel (0) target = $region9
    $region8: #{group_attention_forward.3} parent=1 // pred_region
      %s25 = ssub.s32 512, 512
      %26 = vsyncadd [#allocation5], %s25
      %s27 = sshll.u32 [#allocation4], 4
      %s28 = int_to_ptr.vmem [resolvable:$true] %s27
      %33 = dma.hbm_to_vmem [thread:$0]  %s1, 512, %s28, [#allocation5], 128, 128, 8
    $region9: #{group_attention_forward.3} parent=1 // pred_fallthru
      _
    // Predicated region
    $region10: #{group_attention_forward.3} parent=1 // pred_check
      _
    $region11: #{group_attention_forward.3} parent=1 // pred_check_branch
      %35 = sbr.rel (0) target = $region13
    $region12: #{group_attention_forward.3} parent=1 // pred_region
      %s37 = ssub.s32 16, 16
      %38 = vsyncadd [#allocation5], %s37
      %s40 = sshll.u32 [#allocation6], 4
      %s41 = int_to_ptr.vmem [resolvable:$true] %s40
      %43 = dma.hbm_to_vmem [thread:$0]  %s2, 16, %s41, [#allocation5]
    $region13: #{group_attention_forward.3} parent=1 // pred_fallthru
      _
    // Predicated region
    $region14: #{group_attention_forward.3} parent=1 // pred_check
      _
    $region15: #{group_attention_forward.3} parent=1 // pred_check_branch
      %45 = sbr.rel (0) target = $region17
    $region16: #{group_attention_forward.3} parent=1 // pred_region
      %46 = dma.done [#allocation3], 2048
    $region17: #{group_attention_forward.3} parent=1 // pred_fallthru
      _
    // Predicated region
    $region18: #{group_attention_forward.3} parent=1 // pred_check
      _
    $region19: #{group_attention_forward.3} parent=1 // pred_check_branch
      %48 = sbr.rel (0) target = $region21
    $region20: #{group_attention_forward.3} parent=1 // pred_region
      %49 = dma.done [#allocation5], 512
    $region21: #{group_attention_forward.3} parent=1 // pred_fallthru
      _
    // Predicated region
    $region22: #{group_attention_forward.3} parent=1 // pred_check
      _
    $region23: #{group_attention_forward.3} parent=1 // pred_check_branch
      %51 = sbr.rel (0) target = $region25
    $region24: #{group_attention_forward.3} parent=1 // pred_region
      %52 = dma.done [#allocation5], 16
    $region25: #{group_attention_forward.3} parent=1 // pred_fallthru
      _
    %v53 = vld [vmem:[#allocation2] sm:$0xff]
    %v54 = vld [vmem:[#allocation2 + $0x8] sm:$0xff]
    %v55 = vld [vmem:[#allocation2 + $0x10] sm:$0xff]
    %v56 = vld [vmem:[#allocation2 + $0x18] sm:$0xff]
    %v57 = vld [vmem:[#allocation2 + $0x20] sm:$0xff]
    %v58 = vld [vmem:[#allocation2 + $0x28] sm:$0xff]
    %v59 = vld [vmem:[#allocation2 + $0x30] sm:$0xff]
    %v60 = vld [vmem:[#allocation2 + $0x38] sm:$0xff]
    %v61 = vld [vmem:[#allocation2 + $0x40] sm:$0xff]
    %v62 = vld [vmem:[#allocation2 + $0x48] sm:$0xff]
    %v63 = vld [vmem:[#allocation2 + $0x50] sm:$0xff]
    %v64 = vld [vmem:[#allocation2 + $0x58] sm:$0xff]
    %v65 = vld [vmem:[#allocation2 + $0x60] sm:$0xff]
    %v66 = vld [vmem:[#allocation2 + $0x68] sm:$0xff]
    %v67 = vld [vmem:[#allocation2 + $0x70] sm:$0xff]
    %v68 = vld [vmem:[#allocation2 + $0x78] sm:$0xff]
    %v69 = vld [vmem:[#allocation4] sm:$0xff]
    %v70 = vld [vmem:[#allocation4 + $0x8] sm:$0xff]
    %v71 = vld [vmem:[#allocation4 + $0x10] sm:$0xff]
    %v72 = vld [vmem:[#allocation4 + $0x18] sm:$0xff]
    %v73 = vld [vmem:[#allocation6] sm:$0x1]
    %v75 = vlaneseq
    %v76 = vshrl.u32 %v75, 7
    %v77 = vsub.s32 0, %v76
    %v78 = vrot.slane %v73, %v77
    %vm80 = vcmask 261120
    %v82 = vsel %vm80, %v53, 0
    %v85 = vsel %vm80, %v54, 0
    %v88 = vsel %vm80, %v55, 0
    %v91 = vsel %vm80, %v56, 0
    %v94 = vsel %vm80, %v57, 0
    %v97 = vsel %vm80, %v58, 0
    %v100 = vsel %vm80, %v59, 0
    %v103 = vsel %vm80, %v60, 0
    %v106 = vsel %vm80, %v61, 0
    %v109 = vsel %vm80, %v62, 0
    %v112 = vsel %vm80, %v63, 0
    %v115 = vsel %vm80, %v64, 0
    %v118 = vsel %vm80, %v65, 0
    %v121 = vsel %vm80, %v66, 0
    %v124 = vsel %vm80, %v67, 0
    %v127 = vsel %vm80, %v68, 0
    %129 = vmatprep.subr.mxu0 0.0
    %130 = vmatpush1.msra.mxu0 %v69
    %131 = vmatprep.subr.mxu0 0.0
    %132 = vmatpush1.msra.mxu0 %v70
    %133 = vmatprep.subr.mxu0 0.0
    %134 = vmatpush1.msra.mxu0 %v71
    %135 = vmatprep.subr.mxu0 0.0
    %136 = vmatpush1.msra.mxu0 %v72
    %137 = vmatprep.subr.mxu0 0.0
    %138 = vmatpush1.msra.mxu0 0.0
    %139 = vmatprep.subr.mxu0 0.0
    %140 = vmatpush1.msra.mxu0 0.0
    %141 = vmatprep.subr.mxu0 0.0
    %142 = vmatpush1.msra.mxu0 0.0
    %143 = vmatprep.subr.mxu0 0.0
    %144 = vmatpush1.msra.mxu0 0.0
    %145 = vmatprep.subr.mxu0 0.0
    %146 = vmatpush1.msra.mxu0 0.0
    %147 = vmatprep.subr.mxu0 0.0
    %148 = vmatpush1.msra.mxu0 0.0
    %149 = vmatprep.subr.mxu0 0.0
    %150 = vmatpush1.msra.mxu0 0.0
    %151 = vmatprep.subr.mxu0 0.0
    %152 = vmatpush1.msra.mxu0 0.0
    %153 = vmatprep.subr.mxu0 0.0
    %154 = vmatpush1.msra.mxu0 0.0
    %155 = vmatprep.subr.mxu0 0.0
    %156 = vmatpush1.msra.mxu0 0.0
    %157 = vmatprep.subr.mxu0 0.0
    %158 = vmatpush1.msra.mxu0 0.0
    %159 = vmatprep.subr.mxu0 0.0
    %160 = vmatpush1.msra.mxu0 0.0
    %161 = vmatprep.subr.mxu0 0.0
    %162 = vmatpush1.msra.mxu0 0.0
    %163 = vmatprep.subr.mxu0 0.0
    %164 = vmatpush1.msra.mxu0 0.0
    %165 = vmatprep.subr.mxu0 0.0
    %166 = vmatpush1.msra.mxu0 0.0
    %167 = vmatprep.subr.mxu0 0.0
    %168 = vmatpush1.msra.mxu0 0.0
    %169 = vmatprep.subr.mxu0 0.0
    %170 = vmatpush1.msra.mxu0 0.0
    %171 = vmatprep.subr.mxu0 0.0
    %172 = vmatpush1.msra.mxu0 0.0
    %173 = vmatprep.subr.mxu0 0.0
    %174 = vmatpush1.msra.mxu0 0.0
    %175 = vmatprep.subr.mxu0 0.0
    %176 = vmatpush1.msra.mxu0 0.0
    %177 = vmatprep.subr.mxu0 0.0
    %178 = vmatpush1.msra.mxu0 0.0
    %179 = vmatprep.subr.mxu0 0.0
    %180 = vmatpush1.msra.mxu0 0.0
    %181 = vmatprep.subr.mxu0 0.0
    %182 = vmatpush1.msra.mxu0 0.0
    %183 = vmatprep.subr.mxu0 0.0
    %184 = vmatpush1.msra.mxu0 0.0
    %185 = vmatprep.subr.mxu0 0.0
    %186 = vmatpush1.msra.mxu0 0.0
    %187 = vmatprep.subr.mxu0 0.0
    %188 = vmatpush1.msra.mxu0 0.0
    %189 = vmatprep.subr.mxu0 0.0
    %190 = vmatpush1.msra.mxu0 0.0
    %191 = vmatprep.subr.mxu0 0.0
    %192 = vmatpush1.msra.mxu0 0.0
    %193 = vmatprep.mubr.f32.mxu0 0.0
    %194 = vmatmul.mubr.f32.gmra.mrb[0].mxu0 %v82
    %v195 = vpop.f32.mrb[0].mxu0
    %v196 = vadd.f32 %v78, %v195
    %v197 = vpop.f32.mrb[0].mxu0
    %198 = vmatprep.mubr.f32.mxu0 0.0
    %199 = vmatmul.mubr.f32.gmra.mrb[0].mxu0 %v85
    %v200 = vpop.f32.mrb[0].mxu0
    %v201 = vadd.f32 %v78, %v200
    %v202 = vpop.f32.mrb[0].mxu0
    %203 = vmatprep.mubr.f32.mxu0 0.0
    %204 = vmatmul.mubr.f32.gmra.mrb[0].mxu0 %v88
    %v205 = vpop.f32.mrb[0].mxu0
    %v206 = vadd.f32 %v78, %v205
    %v207 = vpop.f32.mrb[0].mxu0
    %208 = vmatprep.mubr.f32.mxu0 0.0
    %209 = vmatmul.mubr.f32.gmra.mrb[0].mxu0 %v91
    %v210 = vpop.f32.mrb[0].mxu0
    %v211 = vadd.f32 %v78, %v210
    %v212 = vpop.f32.mrb[0].mxu0
    %213 = vmatprep.mubr.f32.mxu0 0.0
    %214 = vmatmul.mubr.f32.gmra.mrb[0].mxu0 %v94
    %v215 = vpop.f32.mrb[0].mxu0
    %v216 = vadd.f32 %v78, %v215
    %v217 = vpop.f32.mrb[0].mxu0
    %218 = vmatprep.mubr.f32.mxu0 0.0
    %219 = vmatmul.mubr.f32.gmra.mrb[0].mxu0 %v97
    %v220 = vpop.f32.mrb[0].mxu0
    %v221 = vadd.f32 %v78, %v220
    %v222 = vpop.f32.mrb[0].mxu0
    %223 = vmatprep.mubr.f32.mxu0 0.0
    %224 = vmatmul.mubr.f32.gmra.mrb[0].mxu0 %v100
    %v225 = vpop.f32.mrb[0].mxu0
    %v226 = vadd.f32 %v78, %v225
    %v227 = vpop.f32.mrb[0].mxu0
    %228 = vmatprep.mubr.f32.mxu0 0.0
    %229 = vmatmul.mubr.f32.gmra.mrb[0].mxu0 %v103
    %v230 = vpop.f32.mrb[0].mxu0
    %v231 = vadd.f32 %v78, %v230
    %v232 = vpop.f32.mrb[0].mxu0
    %233 = vmatprep.mubr.f32.mxu0 0.0
    %234 = vmatmul.mubr.f32.gmra.mrb[0].mxu0 %v106
    %v235 = vpop.f32.mrb[0].mxu0
    %v236 = vadd.f32 %v78, %v235
    %v237 = vpop.f32.mrb[0].mxu0
    %238 = vmatprep.mubr.f32.mxu0 0.0
    %239 = vmatmul.mubr.f32.gmra.mrb[0].mxu0 %v109
    %v240 = vpop.f32.mrb[0].mxu0
    %v241 = vadd.f32 %v78, %v240
    %v242 = vpop.f32.mrb[0].mxu0
    %243 = vmatprep.mubr.f32.mxu0 0.0
    %244 = vmatmul.mubr.f32.gmra.mrb[0].mxu0 %v112
    %v245 = vpop.f32.mrb[0].mxu0
    %v246 = vadd.f32 %v78, %v245
    %v247 = vpop.f32.mrb[0].mxu0
    %248 = vmatprep.mubr.f32.mxu0 0.0
    %249 = vmatmul.mubr.f32.gmra.mrb[0].mxu0 %v115
    %v250 = vpop.f32.mrb[0].mxu0
    %v251 = vadd.f32 %v78, %v250
    %v252 = vpop.f32.mrb[0].mxu0
    %253 = vmatprep.mubr.f32.mxu0 0.0
    %254 = vmatmul.mubr.f32.gmra.mrb[0].mxu0 %v118
    %v255 = vpop.f32.mrb[0].mxu0
    %v256 = vadd.f32 %v78, %v255
    %v257 = vpop.f32.mrb[0].mxu0
    %258 = vmatprep.mubr.f32.mxu0 0.0
    %259 = vmatmul.mubr.f32.gmra.mrb[0].mxu0 %v121
    %v260 = vpop.f32.mrb[0].mxu0
    %v261 = vadd.f32 %v78, %v260
    %v262 = vpop.f32.mrb[0].mxu0
    %263 = vmatprep.mubr.f32.mxu0 0.0
    %264 = vmatmul.mubr.f32.gmra.mrb[0].mxu0 %v124
    %v265 = vpop.f32.mrb[0].mxu0
    %v266 = vadd.f32 %v78, %v265
    %v267 = vpop.f32.mrb[0].mxu0
    %268 = vmatprep.mubr.f32.mxu0 0.0
    %269 = vmatmul.mubr.f32.gmra.mrb[0].mxu0 %v127
    %v270 = vpop.f32.mrb[0].mxu0
    %v271 = vadd.f32 %v78, %v270
    %v272 = vpop.f32.mrb[0].mxu0
    %273 = vdwg.mxu0
    %vm274 = vcmask 785408
    %275 = vst.msk [vmem:[%s3] sm:$0xff] %vm274, %v196
    %276 = vst.msk [vmem:[%s3 + $0x8] sm:$0xff] %vm274, %v201
    %277 = vst.msk [vmem:[%s3 + $0x10] sm:$0xff] %vm274, %v206
    %278 = vst.msk [vmem:[%s3 + $0x18] sm:$0xff] %vm274, %v211
    %279 = vst.msk [vmem:[%s3 + $0x20] sm:$0xff] %vm274, %v216
    %280 = vst.msk [vmem:[%s3 + $0x28] sm:$0xff] %vm274, %v221
    %281 = vst.msk [vmem:[%s3 + $0x30] sm:$0xff] %vm274, %v226
    %282 = vst.msk [vmem:[%s3 + $0x38] sm:$0xff] %vm274, %v231
    %283 = vst.msk [vmem:[%s3 + $0x40] sm:$0xff] %vm274, %v236
    %284 = vst.msk [vmem:[%s3 + $0x48] sm:$0xff] %vm274, %v241
    %285 = vst.msk [vmem:[%s3 + $0x50] sm:$0xff] %vm274, %v246
    %286 = vst.msk [vmem:[%s3 + $0x58] sm:$0xff] %vm274, %v251
    %287 = vst.msk [vmem:[%s3 + $0x60] sm:$0xff] %vm274, %v256
    %288 = vst.msk [vmem:[%s3 + $0x68] sm:$0xff] %vm274, %v261
    %289 = vst.msk [vmem:[%s3 + $0x70] sm:$0xff] %vm274, %v266
    %290 = vst.msk [vmem:[%s3 + $0x78] sm:$0xff] %vm274, %v271
    // Predicated region
    $region26: #{group_attention_forward.3} parent=1 // pred_check
      _
    $region27: #{group_attention_forward.3} parent=1 // pred_check_branch
      %292 = sbr.rel (0) target = $region29
    $region28: #{group_attention_forward.3} parent=1 // pred_region
      _
    $region29: #{group_attention_forward.3} parent=1 // pred_fallthru
      _
    // Predicated region
    $region30: #{group_attention_forward.3} parent=1 // pred_check
      _
    $region31: #{group_attention_forward.3} parent=1 // pred_check_branch
      %294 = sbr.rel (0) target = $region33
    $region32: #{group_attention_forward.3} parent=1 // pred_region
      _
    $region33: #{group_attention_forward.3} parent=1 // pred_fallthru
      _
    %295 = vsyncpa [#allocation3], 1
    %296 = vsyncpa [#allocation5], 1

// kernel: group_attention_forward.4
$region0: #{group_attention_forward.4}
  #allocation0 [shape = 'u32[]', space=smem, size = 0x4, offset = 0x4, fixed_abs, tag = 'smem constant byte address 0x4 - core index']
  #allocation1 [shape = 'u32[144,128]{1,0:T(1,128)}', space=vmem, size = 0x12000, scoped, tag = 'internal scratch']
  %s0 = inlined_call_operand.vmem [shape: f32[2,8,256], index: 0, kind: input, shape index: {}]
  %s1 = inlined_call_operand.vmem [shape: f32[2,8,256], index: 1, kind: input, shape index: {}]
  %s2 = inlined_call_operand.vmem [shape: f32[2,8,256], index: 2, kind: input, shape index: {}]
  %s3 = inlined_call_operand.vmem [shape: f32[2,8,256], index: 3, kind: output, shape index: {}]
  %s4 = sld [smem:[#allocation0]]
  $region22: #{group_attention_forward.4} parent=0
    _
  %s6 = ssub.s32 1, %s4
  %s7 = scalar_select 0, %s6, %s4
  // Predicated region
  $region2: #{group_attention_forward.4} parent=0 // pred_check
    _
  $region3: #{group_attention_forward.4} parent=0 // pred_check_branch
    %9 = sbr.rel (0) target = $region5
  $region4: #{group_attention_forward.4} parent=0 // pred_region
    _
  $region5: #{group_attention_forward.4} parent=0 // pred_fallthru
    _
  // Predicated region
  $region6: #{group_attention_forward.4} parent=0 // pred_check
    _
  $region7: #{group_attention_forward.4} parent=0 // pred_check_branch
    %11 = sbr.rel (0) target = $region9
  $region8: #{group_attention_forward.4} parent=0 // pred_region
    _
  $region9: #{group_attention_forward.4} parent=0 // pred_fallthru
    _
  // Predicated region
  $region10: #{group_attention_forward.4} parent=0 // pred_check
    _
  $region11: #{group_attention_forward.4} parent=0 // pred_check_branch
    %13 = sbr.rel (0) target = $region13
  $region12: #{group_attention_forward.4} parent=0 // pred_region
    _
  $region13: #{group_attention_forward.4} parent=0 // pred_fallthru
    _
  %v14 = vld [vmem:[%s0] sm:$0xff]
  %v15 = vld [vmem:[%s0 + $0x8] sm:$0xff]
  %v16 = vmul.f32 %v14, 0.35355338
  %v17 = vmul.f32 %v15, 0.35355338
  %s18 = scalar_lea.vmem %s0, 16
  %v19 = vld [vmem:[%s18] sm:$0xff]
  %v20 = vld [vmem:[%s18 + $0x8] sm:$0xff]
  %v21 = vmul.f32 %v19, 0.35355338
  %v22 = vmul.f32 %v20, 0.35355338
  %v23 = vld [vmem:[%s1] sm:$0xff]
  %v24 = vld [vmem:[%s1 + $0x8] sm:$0xff]
  %s25 = scalar_lea.vmem %s1, 16
  %v26 = vld [vmem:[%s25] sm:$0xff]
  %v27 = vld [vmem:[%s25 + $0x8] sm:$0xff]
  %v30 = vcombine.low %v16, %v17
  %v31 = vcombine.high %v16, %v17
  %v33 = vunpack.c.l.s4 1966171168
  %v34 = vunpack.c.0.s8 %v33
  %v35 = vlaneseq
  %v36 = vshrl.u32 %v35, 7
  %v37 = vsub.s32 %v34, %v36
  %v38 = vrot.slane %v30, %v37
  %v40 = vunpack.c.l.s4 1966171168
  %v41 = vunpack.c.0.s8 %v40
  %v42 = vlaneseq
  %v43 = vshrl.u32 %v42, 7
  %v44 = vsub.s32 %v41, %v43
  %v45 = vrot.slane %v31, %v44
  %v46 = vcombine.high %v38, %v38
  %v47 = vcombine.high %v45, %v45
  %v49 = vunpack.c.l.s4 1966171168
  %v50 = vunpack.c.0.s8 %v49
  %v51 = vlaneseq
  %v52 = vshrl.u32 %v51, 7
  %v53 = vsub.s32 %v50, %v52
  %v54 = vrot.slane %v38, %v53
  %v56 = vunpack.c.l.s4 1966171168
  %v57 = vunpack.c.0.s8 %v56
  %v58 = vlaneseq
  %v59 = vshrl.u32 %v58, 7
  %v60 = vsub.s32 %v57, %v59
  %v61 = vrot.slane %v45, %v60
  %v63 = vunpack.c.l.s4 1966171168
  %v64 = vunpack.c.0.s8 %v63
  %v65 = vlaneseq
  %v66 = vshrl.u32 %v65, 7
  %v67 = vsub.s32 %v64, %v66
  %v68 = vrot.slane %v46, %v67
  %v70 = vunpack.c.l.s4 1966171168
  %v71 = vunpack.c.0.s8 %v70
  %v72 = vlaneseq
  %v73 = vshrl.u32 %v72, 7
  %v74 = vsub.s32 %v71, %v73
  %v75 = vrot.slane %v47, %v74
  %v76 = vcombine.high %v54, %v54
  %v77 = vcombine.high %v61, %v61
  %v78 = vcombine.high %v68, %v68
  %v79 = vcombine.high %v75, %v75
  %v80 = vlaneseq
  %v81 = vshrl.u32 %v80, 7
  %v82 = vsub.s32 0, %v81
  %v83 = vrot.slane %v54, %v82
  %v84 = vlaneseq
  %v85 = vshrl.u32 %v84, 7
  %v86 = vsub.s32 1, %v85
  %v87 = vrot.slane %v54, %v86
  %v88 = vlaneseq
  %v89 = vshrl.u32 %v88, 7
  %v90 = vsub.s32 0, %v89
  %v91 = vrot.slane %v68, %v90
  %v92 = vlaneseq
  %v93 = vshrl.u32 %v92, 7
  %v94 = vsub.s32 1, %v93
  %v95 = vrot.slane %v68, %v94
  %v96 = vlaneseq
  %v97 = vshrl.u32 %v96, 7
  %v98 = vsub.s32 0, %v97
  %v99 = vrot.slane %v76, %v98
  %v100 = vlaneseq
  %v101 = vshrl.u32 %v100, 7
  %v102 = vsub.s32 1, %v101
  %v103 = vrot.slane %v76, %v102
  %v104 = vlaneseq
  %v105 = vshrl.u32 %v104, 7
  %v106 = vsub.s32 0, %v105
  %v107 = vrot.slane %v78, %v106
  %v108 = vlaneseq
  %v109 = vshrl.u32 %v108, 7
  %v110 = vsub.s32 1, %v109
  %v111 = vrot.slane %v78, %v110
  %v112 = vlaneseq
  %v113 = vshrl.u32 %v112, 7
  %v114 = vsub.s32 0, %v113
  %v115 = vrot.slane %v61, %v114
  %v116 = vlaneseq
  %v117 = vshrl.u32 %v116, 7
  %v118 = vsub.s32 1, %v117
  %v119 = vrot.slane %v61, %v118
  %v120 = vlaneseq
  %v121 = vshrl.u32 %v120, 7
  %v122 = vsub.s32 0, %v121
  %v123 = vrot.slane %v75, %v122
  %v124 = vlaneseq
  %v125 = vshrl.u32 %v124, 7
  %v126 = vsub.s32 1, %v125
  %v127 = vrot.slane %v75, %v126
  %v128 = vlaneseq
  %v129 = vshrl.u32 %v128, 7
  %v130 = vsub.s32 0, %v129
  %v131 = vrot.slane %v77, %v130
  %v132 = vlaneseq
  %v133 = vshrl.u32 %v132, 7
  %v134 = vsub.s32 1, %v133
  %v135 = vrot.slane %v77, %v134
  %v136 = vlaneseq
  %v137 = vshrl.u32 %v136, 7
  %v138 = vsub.s32 0, %v137
  %v139 = vrot.slane %v79, %v138
  %v140 = vlaneseq
  %v141 = vshrl.u32 %v140, 7
  %v142 = vsub.s32 1, %v141
  %v143 = vrot.slane %v79, %v142
  %v160 = vmul.f32 %v83, %v23
  %v161 = vmul.f32 %v87, %v24
  %v162 = vmul.f32 %v91, %v23
  %v163 = vmul.f32 %v95, %v24
  %v164 = vmul.f32 %v99, %v23
  %v165 = vmul.f32 %v103, %v24
  %v166 = vmul.f32 %v107, %v23
  %v167 = vmul.f32 %v111, %v24
  %v168 = vmul.f32 %v115, %v23
  %v169 = vmul.f32 %v119, %v24
  %v170 = vmul.f32 %v123, %v23
  %v171 = vmul.f32 %v127, %v24
  %v172 = vmul.f32 %v131, %v23
  %v173 = vmul.f32 %v135, %v24
  %v174 = vmul.f32 %v139, %v23
  %v175 = vmul.f32 %v143, %v24
  %v178 = vcombine.low %v21, %v22
  %v179 = vcombine.high %v21, %v22
  %v181 = vunpack.c.l.s4 1966171168
  %v182 = vunpack.c.0.s8 %v181
  %v183 = vlaneseq
  %v184 = vshrl.u32 %v183, 7
  %v185 = vsub.s32 %v182, %v184
  %v186 = vrot.slane %v178, %v185
  %v188 = vunpack.c.l.s4 1966171168
  %v189 = vunpack.c.0.s8 %v188
  %v190 = vlaneseq
  %v191 = vshrl.u32 %v190, 7
  %v192 = vsub.s32 %v189, %v191
  %v193 = vrot.slane %v179, %v192
  %v194 = vcombine.high %v186, %v186
  %v195 = vcombine.high %v193, %v193
  %v197 = vunpack.c.l.s4 1966171168
  %v198 = vunpack.c.0.s8 %v197
  %v199 = vlaneseq
  %v200 = vshrl.u32 %v199, 7
  %v201 = vsub.s32 %v198, %v200
  %v202 = vrot.slane %v186, %v201
  %v204 = vunpack.c.l.s4 1966171168
  %v205 = vunpack.c.0.s8 %v204
  %v206 = vlaneseq
  %v207 = vshrl.u32 %v206, 7
  %v208 = vsub.s32 %v205, %v207
  %v209 = vrot.slane %v193, %v208
  %v211 = vunpack.c.l.s4 1966171168
  %v212 = vunpack.c.0.s8 %v211
  %v213 = vlaneseq
  %v214 = vshrl.u32 %v213, 7
  %v215 = vsub.s32 %v212, %v214
  %v216 = vrot.slane %v194, %v215
  %v218 = vunpack.c.l.s4 1966171168
  %v219 = vunpack.c.0.s8 %v218
  %v220 = vlaneseq
  %v221 = vshrl.u32 %v220, 7
  %v222 = vsub.s32 %v219, %v221
  %v223 = vrot.slane %v195, %v222
  %v224 = vcombine.high %v202, %v202
  %v225 = vcombine.high %v209, %v209
  %v226 = vcombine.high %v216, %v216
  %v227 = vcombine.high %v223, %v223
  %v228 = vlaneseq
  %v229 = vshrl.u32 %v228, 7
  %v230 = vsub.s32 0, %v229
  %v231 = vrot.slane %v202, %v230
  %v232 = vlaneseq
  %v233 = vshrl.u32 %v232, 7
  %v234 = vsub.s32 1, %v233
  %v235 = vrot.slane %v202, %v234
  %v236 = vlaneseq
  %v237 = vshrl.u32 %v236, 7
  %v238 = vsub.s32 0, %v237
  %v239 = vrot.slane %v216, %v238
  %v240 = vlaneseq
  %v241 = vshrl.u32 %v240, 7
  %v242 = vsub.s32 1, %v241
  %v243 = vrot.slane %v216, %v242
  %v244 = vlaneseq
  %v245 = vshrl.u32 %v244, 7
  %v246 = vsub.s32 0, %v245
  %v247 = vrot.slane %v224, %v246
  %v248 = vlaneseq
  %v249 = vshrl.u32 %v248, 7
  %v250 = vsub.s32 1, %v249
  %v251 = vrot.slane %v224, %v250
  %v252 = vlaneseq
  %v253 = vshrl.u32 %v252, 7
  %v254 = vsub.s32 0, %v253
  %v255 = vrot.slane %v226, %v254
  %v256 = vlaneseq
  %v257 = vshrl.u32 %v256, 7
  %v258 = vsub.s32 1, %v257
  %v259 = vrot.slane %v226, %v258
  %v260 = vlaneseq
  %v261 = vshrl.u32 %v260, 7
  %v262 = vsub.s32 0, %v261
  %v263 = vrot.slane %v209, %v262
  %v264 = vlaneseq
  %v265 = vshrl.u32 %v264, 7
  %v266 = vsub.s32 1, %v265
  %v267 = vrot.slane %v209, %v266
  %v268 = vlaneseq
  %v269 = vshrl.u32 %v268, 7
  %v270 = vsub.s32 0, %v269
  %v271 = vrot.slane %v223, %v270
  %v272 = vlaneseq
  %v273 = vshrl.u32 %v272, 7
  %v274 = vsub.s32 1, %v273
  %v275 = vrot.slane %v223, %v274
  %v276 = vlaneseq
  %v277 = vshrl.u32 %v276, 7
  %v278 = vsub.s32 0, %v277
  %v279 = vrot.slane %v225, %v278
  %v280 = vlaneseq
  %v281 = vshrl.u32 %v280, 7
  %v282 = vsub.s32 1, %v281
  %v283 = vrot.slane %v225, %v282
  %v284 = vlaneseq
  %v285 = vshrl.u32 %v284, 7
  %v286 = vsub.s32 0, %v285
  %v287 = vrot.slane %v227, %v286
  %v288 = vlaneseq
  %v289 = vshrl.u32 %v288, 7
  %v290 = vsub.s32 1, %v289
  %v291 = vrot.slane %v227, %v290
  %v308 = vmul.f32 %v231, %v26
  %v309 = vmul.f32 %v235, %v27
  %v310 = vmul.f32 %v239, %v26
  %v311 = vmul.f32 %v243, %v27
  %v312 = vmul.f32 %v247, %v26
  %v313 = vmul.f32 %v251, %v27
  %v314 = vmul.f32 %v255, %v26
  %v315 = vmul.f32 %v259, %v27
  %v316 = vmul.f32 %v263, %v26
  %v317 = vmul.f32 %v267, %v27
  %v318 = vmul.f32 %v271, %v26
  %v319 = vmul.f32 %v275, %v27
  %v320 = vmul.f32 %v279, %v26
  %v321 = vmul.f32 %v283, %v27
  %v322 = vmul.f32 %v287, %v26
  %v323 = vmul.f32 %v291, %v27
  %v324 = vadd.f32 %v160, %v308
  %v325 = vadd.f32 %v161, %v309
  %v326 = vadd.f32 %v162, %v310
  %v327 = vadd.f32 %v163, %v311
  %v328 = vadd.f32 %v164, %v312
  %v329 = vadd.f32 %v165, %v313
  %v330 = vadd.f32 %v166, %v314
  %v331 = vadd.f32 %v167, %v315
  %v332 = vadd.f32 %v168, %v316
  %v333 = vadd.f32 %v169, %v317
  %v334 = vadd.f32 %v170, %v318
  %v335 = vadd.f32 %v171, %v319
  %v336 = vadd.f32 %v172, %v320
  %v337 = vadd.f32 %v173, %v321
  %v338 = vadd.f32 %v174, %v322
  %v339 = vadd.f32 %v175, %v323
  %v340 = vrot.slane %v324, 4
  %v341 = vmax.f32 %v324, %v340
  %v342 = vrot.slane %v341, 2
  %v343 = vmax.f32 %v341, %v342
  %v344 = vrot.slane %v343, 1
  %v345 = vmax.f32 %v343, %v344
  %v346 = vrot.slane %v325, 4
  %v347 = vmax.f32 %v325, %v346
  %v348 = vrot.slane %v347, 2
  %v349 = vmax.f32 %v347, %v348
  %v350 = vrot.slane %v349, 1
  %v351 = vmax.f32 %v349, %v350
  %v352 = vrot.slane %v326, 4
  %v353 = vmax.f32 %v326, %v352
  %v354 = vrot.slane %v353, 2
  %v355 = vmax.f32 %v353, %v354
  %v356 = vrot.slane %v355, 1
  %v357 = vmax.f32 %v355, %v356
  %v358 = vrot.slane %v327, 4
  %v359 = vmax.f32 %v327, %v358
  %v360 = vrot.slane %v359, 2
  %v361 = vmax.f32 %v359, %v360
  %v362 = vrot.slane %v361, 1
  %v363 = vmax.f32 %v361, %v362
  %v364 = vrot.slane %v328, 4
  %v365 = vmax.f32 %v328, %v364
  %v366 = vrot.slane %v365, 2
  %v367 = vmax.f32 %v365, %v366
  %v368 = vrot.slane %v367, 1
  %v369 = vmax.f32 %v367, %v368
  %v370 = vrot.slane %v329, 4
  %v371 = vmax.f32 %v329, %v370
  %v372 = vrot.slane %v371, 2
  %v373 = vmax.f32 %v371, %v372
  %v374 = vrot.slane %v373, 1
  %v375 = vmax.f32 %v373, %v374
  %v376 = vrot.slane %v330, 4
  %v377 = vmax.f32 %v330, %v376
  %v378 = vrot.slane %v377, 2
  %v379 = vmax.f32 %v377, %v378
  %v380 = vrot.slane %v379, 1
  %v381 = vmax.f32 %v379, %v380
  %v382 = vrot.slane %v331, 4
  %v383 = vmax.f32 %v331, %v382
  %v384 = vrot.slane %v383, 2
  %v385 = vmax.f32 %v383, %v384
  %v386 = vrot.slane %v385, 1
  %v387 = vmax.f32 %v385, %v386
  %v388 = vrot.slane %v332, 4
  %v389 = vmax.f32 %v332, %v388
  %v390 = vrot.slane %v389, 2
  %v391 = vmax.f32 %v389, %v390
  %v392 = vrot.slane %v391, 1
  %v393 = vmax.f32 %v391, %v392
  %v394 = vrot.slane %v333, 4
  %v395 = vmax.f32 %v333, %v394
  %v396 = vrot.slane %v395, 2
  %v397 = vmax.f32 %v395, %v396
  %v398 = vrot.slane %v397, 1
  %v399 = vmax.f32 %v397, %v398
  %v400 = vrot.slane %v334, 4
  %v401 = vmax.f32 %v334, %v400
  %v402 = vrot.slane %v401, 2
  %v403 = vmax.f32 %v401, %v402
  %v404 = vrot.slane %v403, 1
  %v405 = vmax.f32 %v403, %v404
  %v406 = vrot.slane %v335, 4
  %v407 = vmax.f32 %v335, %v406
  %v408 = vrot.slane %v407, 2
  %v409 = vmax.f32 %v407, %v408
  %v410 = vrot.slane %v409, 1
  %v411 = vmax.f32 %v409, %v410
  %v412 = vrot.slane %v336, 4
  %v413 = vmax.f32 %v336, %v412
  %v414 = vrot.slane %v413, 2
  %v415 = vmax.f32 %v413, %v414
  %v416 = vrot.slane %v415, 1
  %v417 = vmax.f32 %v415, %v416
  %v418 = vrot.slane %v337, 4
  %v419 = vmax.f32 %v337, %v418
  %v420 = vrot.slane %v419, 2
  %v421 = vmax.f32 %v419, %v420
  %v422 = vrot.slane %v421, 1
  %v423 = vmax.f32 %v421, %v422
  %v424 = vrot.slane %v338, 4
  %v425 = vmax.f32 %v338, %v424
  %v426 = vrot.slane %v425, 2
  %v427 = vmax.f32 %v425, %v426
  %v428 = vrot.slane %v427, 1
  %v429 = vmax.f32 %v427, %v428
  %v430 = vrot.slane %v339, 4
  %v431 = vmax.f32 %v339, %v430
  %v432 = vrot.slane %v431, 2
  %v433 = vmax.f32 %v431, %v432
  %v434 = vrot.slane %v433, 1
  %v435 = vmax.f32 %v433, %v434
  %v436 = vsub.f32 %v324, %v345
  %v437 = vsub.f32 %v325, %v351
  %v438 = vsub.f32 %v326, %v357
  %v439 = vsub.f32 %v327, %v363
  %v440 = vsub.f32 %v328, %v369
  %v441 = vsub.f32 %v329, %v375
  %v442 = vsub.f32 %v330, %v381
  %v443 = vsub.f32 %v331, %v387
  %v444 = vsub.f32 %v332, %v393
  %v445 = vsub.f32 %v333, %v399
  %v446 = vsub.f32 %v334, %v405
  %v447 = vsub.f32 %v335, %v411
  %v448 = vsub.f32 %v336, %v417
  %v449 = vsub.f32 %v337, %v423
  %v450 = vsub.f32 %v338, %v429
  %v451 = vsub.f32 %v339, %v435
  %v452 = vmul.f32 %v436, 1.442695
  %v453 = vpow.pop %v452
  %v454 = vmul.f32 %v437, 1.442695
  %v455 = vpow.pop %v454
  %v456 = vmul.f32 %v438, 1.442695
  %v457 = vpow.pop %v456
  %v458 = vmul.f32 %v439, 1.442695
  %v459 = vpow.pop %v458
  %v460 = vmul.f32 %v440, 1.442695
  %v461 = vpow.pop %v460
  %v462 = vmul.f32 %v441, 1.442695
  %v463 = vpow.pop %v462
  %v464 = vmul.f32 %v442, 1.442695
  %v465 = vpow.pop %v464
  %v466 = vmul.f32 %v443, 1.442695
  %v467 = vpow.pop %v466
  %v468 = vmul.f32 %v444, 1.442695
  %v469 = vpow.pop %v468
  %v470 = vmul.f32 %v445, 1.442695
  %v471 = vpow.pop %v470
  %v472 = vmul.f32 %v446, 1.442695
  %v473 = vpow.pop %v472
  %v474 = vmul.f32 %v447, 1.442695
  %v475 = vpow.pop %v474
  %v476 = vmul.f32 %v448, 1.442695
  %v477 = vpow.pop %v476
  %v478 = vmul.f32 %v449, 1.442695
  %v479 = vpow.pop %v478
  %v480 = vmul.f32 %v450, 1.442695
  %v481 = vpow.pop %v480
  %v482 = vmul.f32 %v451, 1.442695
  %v483 = vpow.pop %v482
  %v484 = vrot.slane %v453, 4
  %v485 = vadd.f32 %v453, %v484
  %v486 = vrot.slane %v485, 2
  %v487 = vadd.f32 %v485, %v486
  %v488 = vrot.slane %v487, 1
  %v489 = vadd.f32 %v487, %v488
  %v490 = vrot.slane %v455, 4
  %v491 = vadd.f32 %v455, %v490
  %v492 = vrot.slane %v491, 2
  %v493 = vadd.f32 %v491, %v492
  %v494 = vrot.slane %v493, 1
  %v495 = vadd.f32 %v493, %v494
  %v496 = vrot.slane %v457, 4
  %v497 = vadd.f32 %v457, %v496
  %v498 = vrot.slane %v497, 2
  %v499 = vadd.f32 %v497, %v498
  %v500 = vrot.slane %v499, 1
  %v501 = vadd.f32 %v499, %v500
  %v502 = vrot.slane %v459, 4
  %v503 = vadd.f32 %v459, %v502
  %v504 = vrot.slane %v503, 2
  %v505 = vadd.f32 %v503, %v504
  %v506 = vrot.slane %v505, 1
  %v507 = vadd.f32 %v505, %v506
  %v508 = vrot.slane %v461, 4
  %v509 = vadd.f32 %v461, %v508
  %v510 = vrot.slane %v509, 2
  %v511 = vadd.f32 %v509, %v510
  %v512 = vrot.slane %v511, 1
  %v513 = vadd.f32 %v511, %v512
  %v514 = vrot.slane %v463, 4
  %v515 = vadd.f32 %v463, %v514
  %v516 = vrot.slane %v515, 2
  %v517 = vadd.f32 %v515, %v516
  %v518 = vrot.slane %v517, 1
  %v519 = vadd.f32 %v517, %v518
  %v520 = vrot.slane %v465, 4
  %v521 = vadd.f32 %v465, %v520
  %v522 = vrot.slane %v521, 2
  %v523 = vadd.f32 %v521, %v522
  %v524 = vrot.slane %v523, 1
  %v525 = vadd.f32 %v523, %v524
  %v526 = vrot.slane %v467, 4
  %v527 = vadd.f32 %v467, %v526
  %v528 = vrot.slane %v527, 2
  %v529 = vadd.f32 %v527, %v528
  %v530 = vrot.slane %v529, 1
  %v531 = vadd.f32 %v529, %v530
  %v532 = vrot.slane %v469, 4
  %v533 = vadd.f32 %v469, %v532
  %v534 = vrot.slane %v533, 2
  %v535 = vadd.f32 %v533, %v534
  %v536 = vrot.slane %v535, 1
  %v537 = vadd.f32 %v535, %v536
  %v538 = vrot.slane %v471, 4
  %v539 = vadd.f32 %v471, %v538
  %v540 = vrot.slane %v539, 2
  %v541 = vadd.f32 %v539, %v540
  %v542 = vrot.slane %v541, 1
  %v543 = vadd.f32 %v541, %v542
  %v544 = vrot.slane %v473, 4
  %v545 = vadd.f32 %v473, %v544
  %v546 = vrot.slane %v545, 2
  %v547 = vadd.f32 %v545, %v546
  %v548 = vrot.slane %v547, 1
  %v549 = vadd.f32 %v547, %v548
  %v550 = vrot.slane %v475, 4
  %v551 = vadd.f32 %v475, %v550
  %v552 = vrot.slane %v551, 2
  %v553 = vadd.f32 %v551, %v552
  %v554 = vrot.slane %v553, 1
  %v555 = vadd.f32 %v553, %v554
  %v556 = vrot.slane %v477, 4
  %v557 = vadd.f32 %v477, %v556
  %v558 = vrot.slane %v557, 2
  %v559 = vadd.f32 %v557, %v558
  %v560 = vrot.slane %v559, 1
  %v561 = vadd.f32 %v559, %v560
  %v562 = vrot.slane %v479, 4
  %v563 = vadd.f32 %v479, %v562
  %v564 = vrot.slane %v563, 2
  %v565 = vadd.f32 %v563, %v564
  %v566 = vrot.slane %v565, 1
  %v567 = vadd.f32 %v565, %v566
  %v568 = vrot.slane %v481, 4
  %v569 = vadd.f32 %v481, %v568
  %v570 = vrot.slane %v569, 2
  %v571 = vadd.f32 %v569, %v570
  %v572 = vrot.slane %v571, 1
  %v573 = vadd.f32 %v571, %v572
  %v574 = vrot.slane %v483, 4
  %v575 = vadd.f32 %v483, %v574
  %v576 = vrot.slane %v575, 2
  %v577 = vadd.f32 %v575, %v576
  %v578 = vrot.slane %v577, 1
  %v579 = vadd.f32 %v577, %v578
  %v580 = vrcp.pop %v489
  %v581 = vrcp.pop %v495
  %v582 = vrcp.pop %v501
  %v583 = vrcp.pop %v507
  %v584 = vrcp.pop %v513
  %v585 = vrcp.pop %v519
  %v586 = vrcp.pop %v525
  %v587 = vrcp.pop %v531
  %v588 = vrcp.pop %v537
  %v589 = vrcp.pop %v543
  %v590 = vrcp.pop %v549
  %v591 = vrcp.pop %v555
  %v592 = vrcp.pop %v561
  %v593 = vrcp.pop %v567
  %v594 = vrcp.pop %v573
  %v595 = vrcp.pop %v579
  %v596 = vld [vmem:[%s2] sm:$0xff]
  %v597 = vld [vmem:[%s2 + $0x8] sm:$0xff]
  %v598 = vmul.f32 %v453, %v596
  %v599 = vmul.f32 %v455, %v597
  %v600 = vmul.f32 %v457, %v596
  %v601 = vmul.f32 %v459, %v597
  %v602 = vmul.f32 %v461, %v596
  %v603 = vmul.f32 %v463, %v597
  %v604 = vmul.f32 %v465, %v596
  %v605 = vmul.f32 %v467, %v597
  %v606 = vmul.f32 %v469, %v596
  %v607 = vmul.f32 %v471, %v597
  %v608 = vmul.f32 %v473, %v596
  %v609 = vmul.f32 %v475, %v597
  %v610 = vmul.f32 %v477, %v596
  %v611 = vmul.f32 %v479, %v597
  %v612 = vmul.f32 %v481, %v596
  %v613 = vmul.f32 %v483, %v597
  %v614 = vrot.slane %v598, 4
  %v615 = vadd.f32 %v598, %v614
  %v616 = vrot.slane %v615, 2
  %v617 = vadd.f32 %v615, %v616
  %v618 = vrot.slane %v617, 1
  %v619 = vadd.f32 %v617, %v618
  %v620 = vrot.slane %v599, 4
  %v621 = vadd.f32 %v599, %v620
  %v622 = vrot.slane %v621, 2
  %v623 = vadd.f32 %v621, %v622
  %v624 = vrot.slane %v623, 1
  %v625 = vadd.f32 %v623, %v624
  %v626 = vrot.slane %v600, 4
  %v627 = vadd.f32 %v600, %v626
  %v628 = vrot.slane %v627, 2
  %v629 = vadd.f32 %v627, %v628
  %v630 = vrot.slane %v629, 1
  %v631 = vadd.f32 %v629, %v630
  %v632 = vrot.slane %v601, 4
  %v633 = vadd.f32 %v601, %v632
  %v634 = vrot.slane %v633, 2
  %v635 = vadd.f32 %v633, %v634
  %v636 = vrot.slane %v635, 1
  %v637 = vadd.f32 %v635, %v636
  %v638 = vrot.slane %v602, 4
  %v639 = vadd.f32 %v602, %v638
  %v640 = vrot.slane %v639, 2
  %v641 = vadd.f32 %v639, %v640
  %v642 = vrot.slane %v641, 1
  %v643 = vadd.f32 %v641, %v642
  %v644 = vrot.slane %v603, 4
  %v645 = vadd.f32 %v603, %v644
  %v646 = vrot.slane %v645, 2
  %v647 = vadd.f32 %v645, %v646
  %v648 = vrot.slane %v647, 1
  %v649 = vadd.f32 %v647, %v648
  %v650 = vrot.slane %v604, 4
  %v651 = vadd.f32 %v604, %v650
  %v652 = vrot.slane %v651, 2
  %v653 = vadd.f32 %v651, %v652
  %v654 = vrot.slane %v653, 1
  %v655 = vadd.f32 %v653, %v654
  %v656 = vrot.slane %v605, 4
  %v657 = vadd.f32 %v605, %v656
  %v658 = vrot.slane %v657, 2
  %v659 = vadd.f32 %v657, %v658
  %v660 = vrot.slane %v659, 1
  %v661 = vadd.f32 %v659, %v660
  %v662 = vrot.slane %v606, 4
  %v663 = vadd.f32 %v606, %v662
  %v664 = vrot.slane %v663, 2
  %v665 = vadd.f32 %v663, %v664
  %v666 = vrot.slane %v665, 1
  %v667 = vadd.f32 %v665, %v666
  %v668 = vrot.slane %v607, 4
  %v669 = vadd.f32 %v607, %v668
  %v670 = vrot.slane %v669, 2
  %v671 = vadd.f32 %v669, %v670
  %v672 = vrot.slane %v671, 1
  %v673 = vadd.f32 %v671, %v672
  %v674 = vrot.slane %v608, 4
  %v675 = vadd.f32 %v608, %v674
  %v676 = vrot.slane %v675, 2
  %v677 = vadd.f32 %v675, %v676
  %v678 = vrot.slane %v677, 1
  %v679 = vadd.f32 %v677, %v678
  %v680 = vrot.slane %v609, 4
  %v681 = vadd.f32 %v609, %v680
  %v682 = vrot.slane %v681, 2
  %v683 = vadd.f32 %v681, %v682
  %v684 = vrot.slane %v683, 1
  %v685 = vadd.f32 %v683, %v684
  %v686 = vrot.slane %v610, 4
  %v687 = vadd.f32 %v610, %v686
  %v688 = vrot.slane %v687, 2
  %v689 = vadd.f32 %v687, %v688
  %v690 = vrot.slane %v689, 1
  %v691 = vadd.f32 %v689, %v690
  %v692 = vrot.slane %v611, 4
  %v693 = vadd.f32 %v611, %v692
  %v694 = vrot.slane %v693, 2
  %v695 = vadd.f32 %v693, %v694
  %v696 = vrot.slane %v695, 1
  %v697 = vadd.f32 %v695, %v696
  %v698 = vrot.slane %v612, 4
  %v699 = vadd.f32 %v612, %v698
  %v700 = vrot.slane %v699, 2
  %v701 = vadd.f32 %v699, %v700
  %v702 = vrot.slane %v701, 1
  %v703 = vadd.f32 %v701, %v702
  %v704 = vrot.slane %v613, 4
  %v705 = vadd.f32 %v613, %v704
  %v706 = vrot.slane %v705, 2
  %v707 = vadd.f32 %v705, %v706
  %v708 = vrot.slane %v707, 1
  %v709 = vadd.f32 %v707, %v708
  %v710 = vmul.f32 %v619, %v580
  %v711 = vmul.f32 %v625, %v581
  %v712 = vmul.f32 %v631, %v582
  %v713 = vmul.f32 %v637, %v583
  %v714 = vmul.f32 %v643, %v584
  %v715 = vmul.f32 %v649, %v585
  %v716 = vmul.f32 %v655, %v586
  %v717 = vmul.f32 %v661, %v587
  %v718 = vmul.f32 %v667, %v588
  %v719 = vmul.f32 %v673, %v589
  %v720 = vmul.f32 %v679, %v590
  %v721 = vmul.f32 %v685, %v591
  %v722 = vmul.f32 %v691, %v592
  %v723 = vmul.f32 %v697, %v593
  %v724 = vmul.f32 %v703, %v594
  %v725 = vmul.f32 %v709, %v595
  %vm742 = vcmask 1041409
  %v743 = vsel %vm742, %v712, %v710
  %vm744 = vcmask 1042434
  %v745 = vsel %vm744, %v714, %v743
  %vm746 = vcmask 1043459
  %v747 = vsel %vm746, %v716, %v745
  %vm748 = vcmask 1044484
  %v749 = vsel %vm748, %v718, %v747
  %vm750 = vcmask 1045509
  %v751 = vsel %vm750, %v720, %v749
  %vm752 = vcmask 1046534
  %v753 = vsel %vm752, %v722, %v751
  %vm754 = vcmask 1047559
  %v755 = vsel %vm754, %v724, %v753
  %v756 = vsel %vm742, %v713, %v711
  %v757 = vsel %vm744, %v715, %v756
  %v758 = vsel %vm746, %v717, %v757
  %v759 = vsel %vm748, %v719, %v758
  %v760 = vsel %vm750, %v721, %v759
  %v761 = vsel %vm752, %v723, %v760
  %v762 = vsel %vm754, %v725, %v761
  %765 = vst [vmem:[%s3] sm:$0xff] %v755
  %766 = vst [vmem:[%s3 + $0x8] sm:$0xff] %v762
  %s767 = scalar_lea.vmem %s2, 16
  %v768 = vld [vmem:[%s767] sm:$0xff]
  %v769 = vld [vmem:[%s767 + $0x8] sm:$0xff]
  %v770 = vmul.f32 %v453, %v768
  %v771 = vmul.f32 %v455, %v769
  %v772 = vmul.f32 %v457, %v768
  %v773 = vmul.f32 %v459, %v769
  %v774 = vmul.f32 %v461, %v768
  %v775 = vmul.f32 %v463, %v769
  %v776 = vmul.f32 %v465, %v768
  %v777 = vmul.f32 %v467, %v769
  %v778 = vmul.f32 %v469, %v768
  %v779 = vmul.f32 %v471, %v769
  %v780 = vmul.f32 %v473, %v768
  %v781 = vmul.f32 %v475, %v769
  %v782 = vmul.f32 %v477, %v768
  %v783 = vmul.f32 %v479, %v769
  %v784 = vmul.f32 %v481, %v768
  %v785 = vmul.f32 %v483, %v769
  %v786 = vrot.slane %v770, 4
  %v787 = vadd.f32 %v770, %v786
  %v788 = vrot.slane %v787, 2
  %v789 = vadd.f32 %v787, %v788
  %v790 = vrot.slane %v789, 1
  %v791 = vadd.f32 %v789, %v790
  %v792 = vrot.slane %v771, 4
  %v793 = vadd.f32 %v771, %v792
  %v794 = vrot.slane %v793, 2
  %v795 = vadd.f32 %v793, %v794
  %v796 = vrot.slane %v795, 1
  %v797 = vadd.f32 %v795, %v796
  %v798 = vrot.slane %v772, 4
  %v799 = vadd.f32 %v772, %v798
  %v800 = vrot.slane %v799, 2
  %v801 = vadd.f32 %v799, %v800
  %v802 = vrot.slane %v801, 1
  %v803 = vadd.f32 %v801, %v802
  %v804 = vrot.slane %v773, 4
  %v805 = vadd.f32 %v773, %v804
  %v806 = vrot.slane %v805, 2
  %v807 = vadd.f32 %v805, %v806
  %v808 = vrot.slane %v807, 1
  %v809 = vadd.f32 %v807, %v808
  %v810 = vrot.slane %v774, 4
  %v811 = vadd.f32 %v774, %v810
  %v812 = vrot.slane %v811, 2
  %v813 = vadd.f32 %v811, %v812
  %v814 = vrot.slane %v813, 1
  %v815 = vadd.f32 %v813, %v814
  %v816 = vrot.slane %v775, 4
  %v817 = vadd.f32 %v775, %v816
  %v818 = vrot.slane %v817, 2
  %v819 = vadd.f32 %v817, %v818
  %v820 = vrot.slane %v819, 1
  %v821 = vadd.f32 %v819, %v820
  %v822 = vrot.slane %v776, 4
  %v823 = vadd.f32 %v776, %v822
  %v824 = vrot.slane %v823, 2
  %v825 = vadd.f32 %v823, %v824
  %v826 = vrot.slane %v825, 1
  %v827 = vadd.f32 %v825, %v826
  %v828 = vrot.slane %v777, 4
  %v829 = vadd.f32 %v777, %v828
  %v830 = vrot.slane %v829, 2
  %v831 = vadd.f32 %v829, %v830
  %v832 = vrot.slane %v831, 1
  %v833 = vadd.f32 %v831, %v832
  %v834 = vrot.slane %v778, 4
  %v835 = vadd.f32 %v778, %v834
  %v836 = vrot.slane %v835, 2
  %v837 = vadd.f32 %v835, %v836
  %v838 = vrot.slane %v837, 1
  %v839 = vadd.f32 %v837, %v838
  %v840 = vrot.slane %v779, 4
  %v841 = vadd.f32 %v779, %v840
  %v842 = vrot.slane %v841, 2
  %v843 = vadd.f32 %v841, %v842
  %v844 = vrot.slane %v843, 1
  %v845 = vadd.f32 %v843, %v844
  %v846 = vrot.slane %v780, 4
  %v847 = vadd.f32 %v780, %v846
  %v848 = vrot.slane %v847, 2
  %v849 = vadd.f32 %v847, %v848
  %v850 = vrot.slane %v849, 1
  %v851 = vadd.f32 %v849, %v850
  %v852 = vrot.slane %v781, 4
  %v853 = vadd.f32 %v781, %v852
  %v854 = vrot.slane %v853, 2
  %v855 = vadd.f32 %v853, %v854
  %v856 = vrot.slane %v855, 1
  %v857 = vadd.f32 %v855, %v856
  %v858 = vrot.slane %v782, 4
  %v859 = vadd.f32 %v782, %v858
  %v860 = vrot.slane %v859, 2
  %v861 = vadd.f32 %v859, %v860
  %v862 = vrot.slane %v861, 1
  %v863 = vadd.f32 %v861, %v862
  %v864 = vrot.slane %v783, 4
  %v865 = vadd.f32 %v783, %v864
  %v866 = vrot.slane %v865, 2
  %v867 = vadd.f32 %v865, %v866
  %v868 = vrot.slane %v867, 1
  %v869 = vadd.f32 %v867, %v868
  %v870 = vrot.slane %v784, 4
  %v871 = vadd.f32 %v784, %v870
  %v872 = vrot.slane %v871, 2
  %v873 = vadd.f32 %v871, %v872
  %v874 = vrot.slane %v873, 1
  %v875 = vadd.f32 %v873, %v874
  %v876 = vrot.slane %v785, 4
  %v877 = vadd.f32 %v785, %v876
  %v878 = vrot.slane %v877, 2
  %v879 = vadd.f32 %v877, %v878
  %v880 = vrot.slane %v879, 1
  %v881 = vadd.f32 %v879, %v880
  %v882 = vmul.f32 %v791, %v580
  %v883 = vmul.f32 %v797, %v581
  %v884 = vmul.f32 %v803, %v582
  %v885 = vmul.f32 %v809, %v583
  %v886 = vmul.f32 %v815, %v584
  %v887 = vmul.f32 %v821, %v585
  %v888 = vmul.f32 %v827, %v586
  %v889 = vmul.f32 %v833, %v587
  %v890 = vmul.f32 %v839, %v588
  %v891 = vmul.f32 %v845, %v589
  %v892 = vmul.f32 %v851, %v590
  %v893 = vmul.f32 %v857, %v591
  %v894 = vmul.f32 %v863, %v592
  %v895 = vmul.f32 %v869, %v593
  %v896 = vmul.f32 %v875, %v594
  %v897 = vmul.f32 %v881, %v595
  %v914 = vsel %vm742, %v884, %v882
  %v915 = vsel %vm744, %v886, %v914
  %v916 = vsel %vm746, %v888, %v915
  %v917 = vsel %vm748, %v890, %v916
  %v918 = vsel %vm750, %v892, %v917
  %v919 = vsel %vm752, %v894, %v918
  %v920 = vsel %vm754, %v896, %v919
  %v921 = vsel %vm742, %v885, %v883
  %v922 = vsel %vm744, %v887, %v921
  %v923 = vsel %vm746, %v889, %v922
  %v924 = vsel %vm748, %v891, %v923
  %v925 = vsel %vm750, %v893, %v924
  %v926 = vsel %vm752, %v895, %v925
  %v927 = vsel %vm754, %v897, %v926
  %s930 = scalar_lea.vmem %s3, 16
  %931 = vst [vmem:[%s930] sm:$0xff] %v920
  %932 = vst [vmem:[%s930 + $0x8] sm:$0xff] %v927
  // Predicated region
  $region14: #{group_attention_forward.4} parent=0 // pred_check
    _
  $region15: #{group_attention_forward.4} parent=0 // pred_check_branch
    %934 = sbr.rel (0) target = $region17
  $region16: #{group_attention_forward.4} parent=0 // pred_region
    _
  $region17: #{group_attention_forward.4} parent=0 // pred_fallthru
    _
  // Predicated region
  $region18: #{group_attention_forward.4} parent=0 // pred_check
    _
  $region19: #{group_attention_forward.4} parent=0 // pred_check_branch
    %936 = sbr.rel (0) target = $region21
  $region20: #{group_attention_forward.4} parent=0 // pred_region
    _
  $region21: #{group_attention_forward.4} parent=0 // pred_fallthru
    _

// kernel: group_attention_forward.5
$region0: #{group_attention_forward.5}
  #allocation0 [shape = 'u32[]', space=smem, size = 0x4, offset = 0x4, fixed_abs, tag = 'smem constant byte address 0x4 - core index']
  #allocation1 [shape = 'u32[144,128]{1,0:T(1,128)}', space=vmem, size = 0x12000, scoped, tag = 'internal scratch']
  %s0 = inlined_call_operand.vmem [shape: f32[128,32], index: 0, kind: input, shape index: {}]
  %s1 = inlined_call_operand.vmem [shape: f32[32,32], index: 1, kind: input, shape index: {}]
  %s2 = inlined_call_operand.vmem [shape: f32[1,32], index: 2, kind: input, shape index: {}]
  %s3 = inlined_call_operand.hbm [shape: f32[128,32], index: 3, kind: output, shape index: {}]
  %s4 = sld [smem:[#allocation0]]
  $region22: #{group_attention_forward.5} parent=0
    _
  %s6 = ssub.s32 1, %s4
  %s7 = scalar_select 0, %s6, %s4
  $region1: #{group_attention_forward.5} parent=0
    #allocation2 [shape = 'u8[65536]{0}', space=vmem, size = 0x10000, scoped, tag = 'output window, operand 0, single buffered']
    #allocation3 [shape = 's32[1]{0}', space=sflag, size = 0x4, scoped, tag = 'scoped memory for group_attention_forward.5']
    %8 = vsyncpa [#allocation3], 0
    // Predicated region
    $region2: #{group_attention_forward.5} parent=1 // pred_check
      _
    $region3: #{group_attention_forward.5} parent=1 // pred_check_branch
      %10 = sbr.rel (0) target = $region5
    $region4: #{group_attention_forward.5} parent=1 // pred_region
      _
    $region5: #{group_attention_forward.5} parent=1 // pred_fallthru
      _
    // Predicated region
    $region6: #{group_attention_forward.5} parent=1 // pred_check
      _
    $region7: #{group_attention_forward.5} parent=1 // pred_check_branch
      %12 = sbr.rel (0) target = $region9
    $region8: #{group_attention_forward.5} parent=1 // pred_region
      _
    $region9: #{group_attention_forward.5} parent=1 // pred_fallthru
      _
    // Predicated region
    $region10: #{group_attention_forward.5} parent=1 // pred_check
      _
    $region11: #{group_attention_forward.5} parent=1 // pred_check_branch
      %14 = sbr.rel (0) target = $region13
    $region12: #{group_attention_forward.5} parent=1 // pred_region
      _
    $region13: #{group_attention_forward.5} parent=1 // pred_fallthru
      _
    %v15 = vld [vmem:[%s0] sm:$0xff]
    %v16 = vld [vmem:[%s0 + $0x8] sm:$0xff]
    %v17 = vld [vmem:[%s0 + $0x10] sm:$0xff]
    %v18 = vld [vmem:[%s0 + $0x18] sm:$0xff]
    %v19 = vld [vmem:[%s0 + $0x20] sm:$0xff]
    %v20 = vld [vmem:[%s0 + $0x28] sm:$0xff]
    %v21 = vld [vmem:[%s0 + $0x30] sm:$0xff]
    %v22 = vld [vmem:[%s0 + $0x38] sm:$0xff]
    %v23 = vld [vmem:[%s0 + $0x40] sm:$0xff]
    %v24 = vld [vmem:[%s0 + $0x48] sm:$0xff]
    %v25 = vld [vmem:[%s0 + $0x50] sm:$0xff]
    %v26 = vld [vmem:[%s0 + $0x58] sm:$0xff]
    %v27 = vld [vmem:[%s0 + $0x60] sm:$0xff]
    %v28 = vld [vmem:[%s0 + $0x68] sm:$0xff]
    %v29 = vld [vmem:[%s0 + $0x70] sm:$0xff]
    %v30 = vld [vmem:[%s0 + $0x78] sm:$0xff]
    %v31 = vld [vmem:[%s1] sm:$0xff]
    %v32 = vld [vmem:[%s1 + $0x8] sm:$0xff]
    %v33 = vld [vmem:[%s1 + $0x10] sm:$0xff]
    %v34 = vld [vmem:[%s1 + $0x18] sm:$0xff]
    %v35 = vld [vmem:[%s2] sm:$0x1]
    %v37 = vlaneseq
    %v38 = vshrl.u32 %v37, 7
    %v39 = vsub.s32 0, %v38
    %v40 = vrot.slane %v35, %v39
    %vm42 = vcmask 261120
    %v44 = vsel %vm42, %v15, 0
    %v47 = vsel %vm42, %v16, 0
    %v50 = vsel %vm42, %v17, 0
    %v53 = vsel %vm42, %v18, 0
    %v56 = vsel %vm42, %v19, 0
    %v59 = vsel %vm42, %v20, 0
    %v62 = vsel %vm42, %v21, 0
    %v65 = vsel %vm42, %v22, 0
    %v68 = vsel %vm42, %v23, 0
    %v71 = vsel %vm42, %v24, 0
    %v74 = vsel %vm42, %v25, 0
    %v77 = vsel %vm42, %v26, 0
    %v80 = vsel %vm42, %v27, 0
    %v83 = vsel %vm42, %v28, 0
    %v86 = vsel %vm42, %v29, 0
    %v89 = vsel %vm42, %v30, 0
    %91 = vmatprep.subr.mxu0 0.0
    %92 = vmatpush1.msra.mxu0 %v31
    %93 = vmatprep.subr.mxu0 0.0
    %94 = vmatpush1.msra.mxu0 %v32
    %95 = vmatprep.subr.mxu0 0.0
    %96 = vmatpush1.msra.mxu0 %v33
    %97 = vmatprep.subr.mxu0 0.0
    %98 = vmatpush1.msra.mxu0 %v34
    %99 = vmatprep.subr.mxu0 0.0
    %100 = vmatpush1.msra.mxu0 0.0
    %101 = vmatprep.subr.mxu0 0.0
    %102 = vmatpush1.msra.mxu0 0.0
    %103 = vmatprep.subr.mxu0 0.0
    %104 = vmatpush1.msra.mxu0 0.0
    %105 = vmatprep.subr.mxu0 0.0
    %106 = vmatpush1.msra.mxu0 0.0
    %107 = vmatprep.subr.mxu0 0.0
    %108 = vmatpush1.msra.mxu0 0.0
    %109 = vmatprep.subr.mxu0 0.0
    %110 = vmatpush1.msra.mxu0 0.0
    %111 = vmatprep.subr.mxu0 0.0
    %112 = vmatpush1.msra.mxu0 0.0
    %113 = vmatprep.subr.mxu0 0.0
    %114 = vmatpush1.msra.mxu0 0.0
    %115 = vmatprep.subr.mxu0 0.0
    %116 = vmatpush1.msra.mxu0 0.0
    %117 = vmatprep.subr.mxu0 0.0
    %118 = vmatpush1.msra.mxu0 0.0
    %119 = vmatprep.subr.mxu0 0.0
    %120 = vmatpush1.msra.mxu0 0.0
    %121 = vmatprep.subr.mxu0 0.0
    %122 = vmatpush1.msra.mxu0 0.0
    %123 = vmatprep.subr.mxu0 0.0
    %124 = vmatpush1.msra.mxu0 0.0
    %125 = vmatprep.subr.mxu0 0.0
    %126 = vmatpush1.msra.mxu0 0.0
    %127 = vmatprep.subr.mxu0 0.0
    %128 = vmatpush1.msra.mxu0 0.0
    %129 = vmatprep.subr.mxu0 0.0
    %130 = vmatpush1.msra.mxu0 0.0
    %131 = vmatprep.subr.mxu0 0.0
    %132 = vmatpush1.msra.mxu0 0.0
    %133 = vmatprep.subr.mxu0 0.0
    %134 = vmatpush1.msra.mxu0 0.0
    %135 = vmatprep.subr.mxu0 0.0
    %136 = vmatpush1.msra.mxu0 0.0
    %137 = vmatprep.subr.mxu0 0.0
    %138 = vmatpush1.msra.mxu0 0.0
    %139 = vmatprep.subr.mxu0 0.0
    %140 = vmatpush1.msra.mxu0 0.0
    %141 = vmatprep.subr.mxu0 0.0
    %142 = vmatpush1.msra.mxu0 0.0
    %143 = vmatprep.subr.mxu0 0.0
    %144 = vmatpush1.msra.mxu0 0.0
    %145 = vmatprep.subr.mxu0 0.0
    %146 = vmatpush1.msra.mxu0 0.0
    %147 = vmatprep.subr.mxu0 0.0
    %148 = vmatpush1.msra.mxu0 0.0
    %149 = vmatprep.subr.mxu0 0.0
    %150 = vmatpush1.msra.mxu0 0.0
    %151 = vmatprep.subr.mxu0 0.0
    %152 = vmatpush1.msra.mxu0 0.0
    %153 = vmatprep.subr.mxu0 0.0
    %154 = vmatpush1.msra.mxu0 0.0
    %155 = vmatprep.mubr.f32.mxu0 0.0
    %156 = vmatmul.mubr.f32.gmra.mrb[0].mxu0 %v44
    %v157 = vpop.f32.mrb[0].mxu0
    %v158 = vadd.f32 %v40, %v157
    %v159 = vpop.f32.mrb[0].mxu0
    %160 = vmatprep.mubr.f32.mxu0 0.0
    %161 = vmatmul.mubr.f32.gmra.mrb[0].mxu0 %v47
    %v162 = vpop.f32.mrb[0].mxu0
    %v163 = vadd.f32 %v40, %v162
    %v164 = vpop.f32.mrb[0].mxu0
    %165 = vmatprep.mubr.f32.mxu0 0.0
    %166 = vmatmul.mubr.f32.gmra.mrb[0].mxu0 %v50
    %v167 = vpop.f32.mrb[0].mxu0
    %v168 = vadd.f32 %v40, %v167
    %v169 = vpop.f32.mrb[0].mxu0
    %170 = vmatprep.mubr.f32.mxu0 0.0
    %171 = vmatmul.mubr.f32.gmra.mrb[0].mxu0 %v53
    %v172 = vpop.f32.mrb[0].mxu0
    %v173 = vadd.f32 %v40, %v172
    %v174 = vpop.f32.mrb[0].mxu0
    %175 = vmatprep.mubr.f32.mxu0 0.0
    %176 = vmatmul.mubr.f32.gmra.mrb[0].mxu0 %v56
    %v177 = vpop.f32.mrb[0].mxu0
    %v178 = vadd.f32 %v40, %v177
    %v179 = vpop.f32.mrb[0].mxu0
    %180 = vmatprep.mubr.f32.mxu0 0.0
    %181 = vmatmul.mubr.f32.gmra.mrb[0].mxu0 %v59
    %v182 = vpop.f32.mrb[0].mxu0
    %v183 = vadd.f32 %v40, %v182
    %v184 = vpop.f32.mrb[0].mxu0
    %185 = vmatprep.mubr.f32.mxu0 0.0
    %186 = vmatmul.mubr.f32.gmra.mrb[0].mxu0 %v62
    %v187 = vpop.f32.mrb[0].mxu0
    %v188 = vadd.f32 %v40, %v187
    %v189 = vpop.f32.mrb[0].mxu0
    %190 = vmatprep.mubr.f32.mxu0 0.0
    %191 = vmatmul.mubr.f32.gmra.mrb[0].mxu0 %v65
    %v192 = vpop.f32.mrb[0].mxu0
    %v193 = vadd.f32 %v40, %v192
    %v194 = vpop.f32.mrb[0].mxu0
    %195 = vmatprep.mubr.f32.mxu0 0.0
    %196 = vmatmul.mubr.f32.gmra.mrb[0].mxu0 %v68
    %v197 = vpop.f32.mrb[0].mxu0
    %v198 = vadd.f32 %v40, %v197
    %v199 = vpop.f32.mrb[0].mxu0
    %200 = vmatprep.mubr.f32.mxu0 0.0
    %201 = vmatmul.mubr.f32.gmra.mrb[0].mxu0 %v71
    %v202 = vpop.f32.mrb[0].mxu0
    %v203 = vadd.f32 %v40, %v202
    %v204 = vpop.f32.mrb[0].mxu0
    %205 = vmatprep.mubr.f32.mxu0 0.0
    %206 = vmatmul.mubr.f32.gmra.mrb[0].mxu0 %v74
    %v207 = vpop.f32.mrb[0].mxu0
    %v208 = vadd.f32 %v40, %v207
    %v209 = vpop.f32.mrb[0].mxu0
    %210 = vmatprep.mubr.f32.mxu0 0.0
    %211 = vmatmul.mubr.f32.gmra.mrb[0].mxu0 %v77
    %v212 = vpop.f32.mrb[0].mxu0
    %v213 = vadd.f32 %v40, %v212
    %v214 = vpop.f32.mrb[0].mxu0
    %215 = vmatprep.mubr.f32.mxu0 0.0
    %216 = vmatmul.mubr.f32.gmra.mrb[0].mxu0 %v80
    %v217 = vpop.f32.mrb[0].mxu0
    %v218 = vadd.f32 %v40, %v217
    %v219 = vpop.f32.mrb[0].mxu0
    %220 = vmatprep.mubr.f32.mxu0 0.0
    %221 = vmatmul.mubr.f32.gmra.mrb[0].mxu0 %v83
    %v222 = vpop.f32.mrb[0].mxu0
    %v223 = vadd.f32 %v40, %v222
    %v224 = vpop.f32.mrb[0].mxu0
    %225 = vmatprep.mubr.f32.mxu0 0.0
    %226 = vmatmul.mubr.f32.gmra.mrb[0].mxu0 %v86
    %v227 = vpop.f32.mrb[0].mxu0
    %v228 = vadd.f32 %v40, %v227
    %v229 = vpop.f32.mrb[0].mxu0
    %230 = vmatprep.mubr.f32.mxu0 0.0
    %231 = vmatmul.mubr.f32.gmra.mrb[0].mxu0 %v89
    %v232 = vpop.f32.mrb[0].mxu0
    %v233 = vadd.f32 %v40, %v232
    %v234 = vpop.f32.mrb[0].mxu0
    %235 = vdwg.mxu0
    %236 = vst.msk [vmem:[#allocation2] sm:$0xff] %vm42, %v158
    %237 = vst.msk [vmem:[#allocation2 + $0x8] sm:$0xff] %vm42, %v163
    %238 = vst.msk [vmem:[#allocation2 + $0x10] sm:$0xff] %vm42, %v168
    %239 = vst.msk [vmem:[#allocation2 + $0x18] sm:$0xff] %vm42, %v173
    %240 = vst.msk [vmem:[#allocation2 + $0x20] sm:$0xff] %vm42, %v178
    %241 = vst.msk [vmem:[#allocation2 + $0x28] sm:$0xff] %vm42, %v183
    %242 = vst.msk [vmem:[#allocation2 + $0x30] sm:$0xff] %vm42, %v188
    %243 = vst.msk [vmem:[#allocation2 + $0x38] sm:$0xff] %vm42, %v193
    %244 = vst.msk [vmem:[#allocation2 + $0x40] sm:$0xff] %vm42, %v198
    %245 = vst.msk [vmem:[#allocation2 + $0x48] sm:$0xff] %vm42, %v203
    %246 = vst.msk [vmem:[#allocation2 + $0x50] sm:$0xff] %vm42, %v208
    %247 = vst.msk [vmem:[#allocation2 + $0x58] sm:$0xff] %vm42, %v213
    %248 = vst.msk [vmem:[#allocation2 + $0x60] sm:$0xff] %vm42, %v218
    %249 = vst.msk [vmem:[#allocation2 + $0x68] sm:$0xff] %vm42, %v223
    %250 = vst.msk [vmem:[#allocation2 + $0x70] sm:$0xff] %vm42, %v228
    %251 = vst.msk [vmem:[#allocation2 + $0x78] sm:$0xff] %vm42, %v233
    // Predicated region
    $region14: #{group_attention_forward.5} parent=1 // pred_check
      _
    $region15: #{group_attention_forward.5} parent=1 // pred_check_branch
      %253 = sbr.rel (0) target = $region17
    $region16: #{group_attention_forward.5} parent=1 // pred_region
      %s255 = ssub.s32 2048, 2048
      %256 = vsyncadd [#allocation3], %s255
      %s257 = sshll.u32 [#allocation2], 4
      %s258 = int_to_ptr.vmem [resolvable:$true] %s257
      %263 = dma.vmem_to_hbm [thread:$0]  %s258, 2048, %s3, [#allocation3], 128, 128, 8
    $region17: #{group_attention_forward.5} parent=1 // pred_fallthru
      _
    // Predicated region
    $region18: #{group_attention_forward.5} parent=1 // pred_check
      _
    $region19: #{group_attention_forward.5} parent=1 // pred_check_branch
      %265 = sbr.rel (0) target = $region21
    $region20: #{group_attention_forward.5} parent=1 // pred_region
      %266 = dma.done [#allocation3], 2048
    $region21: #{group_attention_forward.5} parent=1 // pred_fallthru
      _
    %267 = vsyncpa [#allocation3], 1

</llo_original>
